<compile_context>
chip_gen: v5e
topology: v5e:2x2
jax: 0.10.0
libtpu: 0.0.40
codegen_flags: <defaults>
</compile_context>

<pallas_src>
import math
from functools import partial

import jax
import jax.numpy as jnp
from jax.experimental import pallas as pl
from jax.experimental.pallas import tpu as pltpu


# ----------------------------- host-side constant builders -------------------

def _gauss_taps_1d(k, sigma, trim=1e-12):
    """1-D taps (offset, weight) of the separable gaussian; ~zero taps dropped."""
    pad = k // 2
    w = []
    for i in range(k):
        d = -1.0 + 2.0 * i / (k - 1)                 # torch.linspace(-1, 1, k)
        w.append(math.exp(-(d * d) / (2.0 * sigma * sigma)))
    s = sum(w)
    return tuple((i - pad, wi / s) for i, wi in enumerate(w) if wi / s > trim)


def _sobel_2d(k):
    """s2d = x / (x^2 + y^2) / 6 with denominator[:, k//2] = 1 (as in torch)."""
    pad = k // 2
    rng = [(-pad + i * (2.0 * pad) / (k - 1)) for i in range(k)]
    s2d = [[0.0] * k for _ in range(k)]
    for i in range(k):
        for j in range(k):
            xv, yv = rng[i], rng[j]
            denom = 1.0 if j == pad else (xv * xv + yv * yv)
            s2d[i][j] = xv / denom / 6.0
    return s2d


# ----------------------------- in-kernel shift helpers ------------------------

def _cyc(x, d, axis):
    """Cyclic shift: result[i] = x[(i + d) % n] along `axis` (XLU roll)."""
    n = x.shape[axis]
    s = (-d) % n
    if s == 0:
        return x
    return pltpu.roll(x, s, axis)


def _reflect_shifts(x, offsets, axis, idx):
    """Views v_d[i] = x[reflect(i + d)] (PyTorch 'reflect') for d in offsets.

    Built from shared cyclic rolls plus iota-mask border fix-ups; |d| <= 2.
    """
    n = x.shape[axis]
    need = {0}
    for d in offsets:
        need.add(d)
        need.add(-d)
    cyc = {d: _cyc(x, d, axis) for d in sorted(need)}
    out = {}
    for d in offsets:
        r = cyc[d]
        if d == -1:
            r = jnp.where(idx == 0, cyc[1], r)
        elif d == 1:
            r = jnp.where(idx == n - 1, cyc[-1], r)
        elif d == -2:
            r = jnp.where(idx == 0, cyc[2], r)
            r = jnp.where(idx == 1, cyc[0], r)
        elif d == 2:
            r = jnp.where(idx == n - 1, cyc[-2], r)
            r = jnp.where(idx == n - 2, cyc[0], r)
        out[d] = r
    return out


def _zero_shift(x, d, axis, idx):
    """x shifted by d (|d| == 1) along `axis`, zero outside the border."""
    n = x.shape[axis]
    r = _cyc(x, d, axis)
    if d < 0:
        return jnp.where(idx == 0, 0.0, r)
    return jnp.where(idx == n - 1, 0.0, r)


# ----------------------------- the Pallas kernel ------------------------------

def make_canny_kernel(thresh_lo, thresh_hi, C, H, W, gauss_taps, s2d, sobel_k):
    pad = sobel_k // 2
    offs = tuple(range(-pad, pad + 1))
    g_offs = tuple(d for d, _ in gauss_taps)

    def kernel(x_ref, inv_ref, o_ref):
        row_idx = jax.lax.broadcasted_iota(jnp.int32, (H, W), 0)
        col_idx = jax.lax.broadcasted_iota(jnp.int32, (H, W), 1)

        # ---- channel L2 norm with the (hoisted) global 1/max folded in.
        ssq = x_ref[0, 0, :, :] * x_ref[0, 0, :, :]
        for c in range(1, C):
            xc = x_ref[0, c, :, :]
            ssq = ssq + xc * xc
        img = jnp.sqrt(ssq) * inv_ref[0, 0]

        # ---- separable gaussian blur, reflect borders (trimmed taps).
        rsh = _reflect_shifts(img, g_offs, 0, row_idx)
        tmp = None
        for d, wgt in gauss_taps:
            t = rsh[d] * wgt
            tmp = t if tmp is None else tmp + t
        csh = _reflect_shifts(tmp, g_offs, 1, col_idx)
        smooth = None
        for d, wgt in gauss_taps:
            t = csh[d] * wgt
            smooth = t if smooth is None else smooth + t

        # ---- 5x5 sobel x / y (reflect borders); both share the shifted views.
        rows = _reflect_shifts(smooth, offs, 0, row_idx)
        sob_x = None
        sob_y = None
        for di in offs:
            cols = _reflect_shifts(rows[di], offs, 1, col_idx)
            for dj in offs:
                wx = s2d[dj + pad][di + pad]        # sobel_x weight = s2d.T
                wy = s2d[di + pad][dj + pad]        # sobel_y weight = s2d
                v = cols[dj]
                if wx != 0.0:
                    sob_x = v * wx if sob_x is None else sob_x + v * wx
                if wy != 0.0:
                    sob_y = v * wy if sob_y is None else sob_y + v * wy

        grad_mag = jnp.sqrt(sob_x * sob_x + sob_y * sob_y)

        # ---- phase bin = round(atan2(sob_x, sob_y + 1e-5) / (pi/4)) via octants.
        xr = sob_y + 1e-5
        yr = sob_x
        ax = jnp.abs(xr)
        ay = jnp.abs(yr)
        t8 = 0.4142135623730951                      # tan(pi/8)
        s = jnp.where(ay <= ax * t8, 0,
                      jnp.where(ax < ay * t8, 2, 1)).astype(jnp.int32)
        bin_pos = jnp.where(yr >= 0, s, -s)
        bin_neg = jnp.where(yr >= 0, 4 - s, s - 4)
        bin_ = jnp.where(xr >= 0, bin_pos, bin_neg)  # {-4..4}
        pm = jnp.bitwise_and(bin_ + 4, 3)            # selection-pair id 0..3

        # ---- non-max suppression; neighbour pairs folded in one at a time
        #      (zero-padded shifts; only the +-1 row shifts are kept live).
        up = _zero_shift(grad_mag, -1, 0, row_idx)
        dn = _zero_shift(grad_mag, 1, 0, row_idx)
        sup = (pm == 0) & ((grad_mag < up) | (grad_mag < dn))
        sup = sup | ((pm == 1) & ((grad_mag < _zero_shift(up, -1, 1, col_idx)) |
                                  (grad_mag < _zero_shift(dn, 1, 1, col_idx))))
        sup = sup | ((pm == 2) & ((grad_mag < _zero_shift(grad_mag, -1, 1, col_idx)) |
                                  (grad_mag < _zero_shift(grad_mag, 1, 1, col_idx))))
        sup = sup | ((pm == 3) & ((grad_mag < _zero_shift(up, 1, 1, col_idx)) |
                                  (grad_mag < _zero_shift(dn, -1, 1, col_idx))))
        gm = jnp.where(sup, 0.0, grad_mag)

        # ---- double threshold + hysteresis (3x3 reflect box sum, separable).
        gm = jnp.where(gm < thresh_lo, 0.0, gm)
        weak = (gm < thresh_hi) & (gm > thresh_lo)
        high = gm > thresh_hi
        hf = high.astype(jnp.float32)
        cw = _reflect_shifts(hf, (-1, 1), 1, col_idx)
        colsum = cw[-1] + hf + cw[1]
        rw = _reflect_shifts(colsum, (-1, 1), 0, row_idx)
        hn = rw[-1] + colsum + rw[1]

        weak_keep = weak & (hn > 0)
        not_edge = jnp.logical_not(weak_keep) & jnp.logical_not(high)
        o_ref[0, 0, :, :] = jnp.where(not_edge, 0.0, gm)

    return kernel


# ----------------------------- wrapper ----------------------------------------

@partial(jax.jit,
         static_argnames=("thresh_lo", "thresh_hi", "sobel_k", "gauss_k",
                          "gauss_sigma"))
def canny_pallas(x, thresh_lo=0.05, thresh_hi=0.2,
                 sobel_k=5, gauss_k=5, gauss_sigma=0.1):
    assert sobel_k <= 5 and gauss_k <= 5, "reflect helper supports |offset|<=2"
    x = x.astype(jnp.float32)
    B, C, H, W = x.shape

    # Global normalization factor hoisted out of the kernel (plain JAX):
    # max over the whole batch of the per-pixel channel L2 norm.
    ssq_max = jnp.max(jnp.sum(x * x, axis=1))
    inv_max = (1.0 / jnp.sqrt(ssq_max)).reshape(1, 1).astype(jnp.float32)

    gauss_taps = _gauss_taps_1d(gauss_k, gauss_sigma)
    s2d = _sobel_2d(sobel_k)

    kernel = make_canny_kernel(float(thresh_lo), float(thresh_hi),
                               C, H, W, gauss_taps, s2d, sobel_k)

    # VMEM budget: double-buffered input/output blocks + in-kernel temporaries.
    est = 4 * H * W * (2 * C + 2 + 40)
    vmem_limit = int(min(48 * 1024 * 1024, max(32 * 1024 * 1024, est)))

    out = pl.pallas_call(
        kernel,
        out_shape=jax.ShapeDtypeStruct((B, 1, H, W), jnp.float32),
        grid=(B,),
        in_specs=[
            pl.BlockSpec((1, C, H, W), lambda b: (b, 0, 0, 0)),              # image
            pl.BlockSpec(memory_space=pltpu.MemorySpace.SMEM),               # 1/max
        ],
        out_specs=pl.BlockSpec((1, 1, H, W), lambda b: (b, 0, 0, 0)),
        compiler_params=pltpu.CompilerParams(
            dimension_semantics=("parallel",),
            vmem_limit_bytes=vmem_limit,
        ),
    )(x, inv_max)

    return out


if __name__ == "__main__":
    key = jax.random.PRNGKey(0)
    x = jax.random.uniform(key, (2, 4, 16, 16), dtype=jnp.float32)

    out = canny_pallas(x, thresh_lo=0.05, thresh_hi=0.2)
    jax.block_until_ready(out)

    assert out.shape == (2, 1, 16, 16)
    assert bool(jnp.all(jnp.isfinite(out)))
    print("KERNEL_OK")
</pallas_src>

<mosaic_0001>
module attributes {stable_mosaic.version = 11 : i64} {
  func.func @kernel(%arg0: i32, %arg1: memref<1x4x16x16xf32, #tpu.memory_space<vmem>>, %arg2: memref<1x1xf32, #tpu.memory_space<smem>>, %arg3: memref<1x1x16x16xf32, #tpu.memory_space<vmem>>) attributes {dimension_semantics = [#tpu.dimension_semantics<parallel>], iteration_bounds = array<i64: 2>, scalar_prefetch = 0 : i64, scratch_operands = 0 : i64, tpu.core_type = #tpu.core_type<tc>, window_params = [{transform_indices = @transform_0, window_bounds = array<i64: 1, 4, 16, 16>}, {transform_indices = @transform_1, window_bounds = array<i64: 1, 1>}, {transform_indices = @transform_2, window_bounds = array<i64: 1, 1, 16, 16>}]} {
    %0 = tpu.iota {dimensions = array<i32: 0>} : vector<16x16xi32>
    %1 = tpu.iota {dimensions = array<i32: 1>} : vector<16x16xi32>
    %c0 = arith.constant 0 : index
    %c0_0 = arith.constant 0 : index
    %c0_1 = arith.constant 0 : index
    %c0_2 = arith.constant 0 : index
    %2 = vector.load %arg1[%c0, %c0_0, %c0_1, %c0_2] : memref<1x4x16x16xf32, #tpu.memory_space<vmem>>, vector<1x1x16x16xf32>
    %3 = vector.shape_cast %2 : vector<1x1x16x16xf32> to vector<16x16xf32>
    %c0_3 = arith.constant 0 : index
    %c0_4 = arith.constant 0 : index
    %c0_5 = arith.constant 0 : index
    %c0_6 = arith.constant 0 : index
    %4 = vector.load %arg1[%c0_3, %c0_4, %c0_5, %c0_6] : memref<1x4x16x16xf32, #tpu.memory_space<vmem>>, vector<1x1x16x16xf32>
    %5 = vector.shape_cast %4 : vector<1x1x16x16xf32> to vector<16x16xf32>
    %6 = arith.mulf %3, %5 : vector<16x16xf32>
    %c0_7 = arith.constant 0 : index
    %c1 = arith.constant 1 : index
    %c0_8 = arith.constant 0 : index
    %c0_9 = arith.constant 0 : index
    %7 = vector.load %arg1[%c0_7, %c1, %c0_8, %c0_9] : memref<1x4x16x16xf32, #tpu.memory_space<vmem>>, vector<1x1x16x16xf32>
    %8 = vector.shape_cast %7 : vector<1x1x16x16xf32> to vector<16x16xf32>
    %9 = arith.mulf %8, %8 : vector<16x16xf32>
    %10 = arith.addf %6, %9 : vector<16x16xf32>
    %c0_10 = arith.constant 0 : index
    %c2 = arith.constant 2 : index
    %c0_11 = arith.constant 0 : index
    %c0_12 = arith.constant 0 : index
    %11 = vector.load %arg1[%c0_10, %c2, %c0_11, %c0_12] : memref<1x4x16x16xf32, #tpu.memory_space<vmem>>, vector<1x1x16x16xf32>
    %12 = vector.shape_cast %11 : vector<1x1x16x16xf32> to vector<16x16xf32>
    %13 = arith.mulf %12, %12 : vector<16x16xf32>
    %14 = arith.addf %10, %13 : vector<16x16xf32>
    %c0_13 = arith.constant 0 : index
    %c3 = arith.constant 3 : index
    %c0_14 = arith.constant 0 : index
    %c0_15 = arith.constant 0 : index
    %15 = vector.load %arg1[%c0_13, %c3, %c0_14, %c0_15] : memref<1x4x16x16xf32, #tpu.memory_space<vmem>>, vector<1x1x16x16xf32>
    %16 = vector.shape_cast %15 : vector<1x1x16x16xf32> to vector<16x16xf32>
    %17 = arith.mulf %16, %16 : vector<16x16xf32>
    %18 = arith.addf %14, %17 : vector<16x16xf32>
    %19 = math.sqrt %18 : vector<16x16xf32>
    %c0_16 = arith.constant 0 : index
    %c0_17 = arith.constant 0 : index
    %20 = memref.load %arg2[%c0_16, %c0_17] : memref<1x1xf32, #tpu.memory_space<smem>>
    %21 = vector.broadcast %20 : f32 to vector<16x16xf32>
    %22 = arith.mulf %19, %21 : vector<16x16xf32>
    %c1_i32 = arith.constant 1 : i32
    %23 = tpu.dynamic_rotate %22 by %c1_i32 dim 0 : vector<16x16xf32>, i32 -> vector<16x16xf32>
    %c15_i32 = arith.constant 15 : i32
    %24 = tpu.dynamic_rotate %22 by %c15_i32 dim 0 : vector<16x16xf32>, i32 -> vector<16x16xf32>
    %c0_i32 = arith.constant 0 : i32
    %25 = vector.broadcast %c0_i32 : i32 to vector<16x16xi32>
    %26 = arith.cmpi eq, %0, %25 : vector<16x16xi32>
    %27 = arith.select %26, %24, %23 : vector<16x16xi1>, vector<16x16xf32>
    %c15_i32_18 = arith.constant 15 : i32
    %28 = vector.broadcast %c15_i32_18 : i32 to vector<16x16xi32>
    %29 = arith.cmpi eq, %0, %28 : vector<16x16xi32>
    %30 = arith.select %29, %23, %24 : vector<16x16xi1>, vector<16x16xf32>
    %cst = arith.constant 3.72662544E-6 : f32
    %31 = vector.broadcast %cst : f32 to vector<16x16xf32>
    %32 = arith.mulf %27, %31 : vector<16x16xf32>
    %cst_19 = arith.constant 0.999992549 : f32
    %33 = vector.broadcast %cst_19 : f32 to vector<16x16xf32>
    %34 = arith.mulf %22, %33 : vector<16x16xf32>
    %35 = arith.addf %32, %34 : vector<16x16xf32>
    %cst_20 = arith.constant 3.72662544E-6 : f32
    %36 = vector.broadcast %cst_20 : f32 to vector<16x16xf32>
    %37 = arith.mulf %30, %36 : vector<16x16xf32>
    %38 = arith.addf %35, %37 : vector<16x16xf32>
    %c1_i32_21 = arith.constant 1 : i32
    %39 = tpu.dynamic_rotate %38 by %c1_i32_21 dim 1 : vector<16x16xf32>, i32 -> vector<16x16xf32>
    %c15_i32_22 = arith.constant 15 : i32
    %40 = tpu.dynamic_rotate %38 by %c15_i32_22 dim 1 : vector<16x16xf32>, i32 -> vector<16x16xf32>
    %c0_i32_23 = arith.constant 0 : i32
    %41 = vector.broadcast %c0_i32_23 : i32 to vector<16x16xi32>
    %42 = arith.cmpi eq, %1, %41 : vector<16x16xi32>
    %43 = arith.select %42, %40, %39 : vector<16x16xi1>, vector<16x16xf32>
    %c15_i32_24 = arith.constant 15 : i32
    %44 = vector.broadcast %c15_i32_24 : i32 to vector<16x16xi32>
    %45 = arith.cmpi eq, %1, %44 : vector<16x16xi32>
    %46 = arith.select %45, %39, %40 : vector<16x16xi1>, vector<16x16xf32>
    %cst_25 = arith.constant 3.72662544E-6 : f32
    %47 = vector.broadcast %cst_25 : f32 to vector<16x16xf32>
    %48 = arith.mulf %43, %47 : vector<16x16xf32>
    %cst_26 = arith.constant 0.999992549 : f32
    %49 = vector.broadcast %cst_26 : f32 to vector<16x16xf32>
    %50 = arith.mulf %38, %49 : vector<16x16xf32>
    %51 = arith.addf %48, %50 : vector<16x16xf32>
    %cst_27 = arith.constant 3.72662544E-6 : f32
    %52 = vector.broadcast %cst_27 : f32 to vector<16x16xf32>
    %53 = arith.mulf %46, %52 : vector<16x16xf32>
    %54 = arith.addf %51, %53 : vector<16x16xf32>
    %c2_i32 = arith.constant 2 : i32
    %55 = tpu.dynamic_rotate %54 by %c2_i32 dim 0 : vector<16x16xf32>, i32 -> vector<16x16xf32>
    %c1_i32_28 = arith.constant 1 : i32
    %56 = tpu.dynamic_rotate %54 by %c1_i32_28 dim 0 : vector<16x16xf32>, i32 -> vector<16x16xf32>
    %c15_i32_29 = arith.constant 15 : i32
    %57 = tpu.dynamic_rotate %54 by %c15_i32_29 dim 0 : vector<16x16xf32>, i32 -> vector<16x16xf32>
    %c14_i32 = arith.constant 14 : i32
    %58 = tpu.dynamic_rotate %54 by %c14_i32 dim 0 : vector<16x16xf32>, i32 -> vector<16x16xf32>
    %c0_i32_30 = arith.constant 0 : i32
    %59 = vector.broadcast %c0_i32_30 : i32 to vector<16x16xi32>
    %60 = arith.cmpi eq, %0, %59 : vector<16x16xi32>
    %61 = arith.select %60, %58, %55 : vector<16x16xi1>, vector<16x16xf32>
    %c1_i32_31 = arith.constant 1 : i32
    %62 = vector.broadcast %c1_i32_31 : i32 to vector<16x16xi32>
    %63 = arith.cmpi eq, %0, %62 : vector<16x16xi32>
    %64 = arith.select %63, %54, %61 : vector<16x16xi1>, vector<16x16xf32>
    %c0_i32_32 = arith.constant 0 : i32
    %65 = vector.broadcast %c0_i32_32 : i32 to vector<16x16xi32>
    %66 = arith.cmpi eq, %0, %65 : vector<16x16xi32>
    %67 = arith.select %66, %57, %56 : vector<16x16xi1>, vector<16x16xf32>
    %c15_i32_33 = arith.constant 15 : i32
    %68 = vector.broadcast %c15_i32_33 : i32 to vector<16x16xi32>
    %69 = arith.cmpi eq, %0, %68 : vector<16x16xi32>
    %70 = arith.select %69, %56, %57 : vector<16x16xi1>, vector<16x16xf32>
    %c15_i32_34 = arith.constant 15 : i32
    %71 = vector.broadcast %c15_i32_34 : i32 to vector<16x16xi32>
    %72 = arith.cmpi eq, %0, %71 : vector<16x16xi32>
    %73 = arith.select %72, %55, %58 : vector<16x16xi1>, vector<16x16xf32>
    %c14_i32_35 = arith.constant 14 : i32
    %74 = vector.broadcast %c14_i32_35 : i32 to vector<16x16xi32>
    %75 = arith.cmpi eq, %0, %74 : vector<16x16xi32>
    %76 = arith.select %75, %54, %73 : vector<16x16xi1>, vector<16x16xf32>
    %c2_i32_36 = arith.constant 2 : i32
    %77 = tpu.dynamic_rotate %64 by %c2_i32_36 dim 1 : vector<16x16xf32>, i32 -> vector<16x16xf32>
    %c1_i32_37 = arith.constant 1 : i32
    %78 = tpu.dynamic_rotate %64 by %c1_i32_37 dim 1 : vector<16x16xf32>, i32 -> vector<16x16xf32>
    %c15_i32_38 = arith.constant 15 : i32
    %79 = tpu.dynamic_rotate %64 by %c15_i32_38 dim 1 : vector<16x16xf32>, i32 -> vector<16x16xf32>
    %c14_i32_39 = arith.constant 14 : i32
    %80 = tpu.dynamic_rotate %64 by %c14_i32_39 dim 1 : vector<16x16xf32>, i32 -> vector<16x16xf32>
    %c0_i32_40 = arith.constant 0 : i32
    %81 = vector.broadcast %c0_i32_40 : i32 to vector<16x16xi32>
    %82 = arith.cmpi eq, %1, %81 : vector<16x16xi32>
    %83 = arith.select %82, %80, %77 : vector<16x16xi1>, vector<16x16xf32>
    %c1_i32_41 = arith.constant 1 : i32
    %84 = vector.broadcast %c1_i32_41 : i32 to vector<16x16xi32>
    %85 = arith.cmpi eq, %1, %84 : vector<16x16xi32>
    %86 = arith.select %85, %64, %83 : vector<16x16xi1>, vector<16x16xf32>
    %c0_i32_42 = arith.constant 0 : i32
    %87 = vector.broadcast %c0_i32_42 : i32 to vector<16x16xi32>
    %88 = arith.cmpi eq, %1, %87 : vector<16x16xi32>
    %89 = arith.select %88, %79, %78 : vector<16x16xi1>, vector<16x16xf32>
    %c15_i32_43 = arith.constant 15 : i32
    %90 = vector.broadcast %c15_i32_43 : i32 to vector<16x16xi32>
    %91 = arith.cmpi eq, %1, %90 : vector<16x16xi32>
    %92 = arith.select %91, %78, %79 : vector<16x16xi1>, vector<16x16xf32>
    %c15_i32_44 = arith.constant 15 : i32
    %93 = vector.broadcast %c15_i32_44 : i32 to vector<16x16xi32>
    %94 = arith.cmpi eq, %1, %93 : vector<16x16xi32>
    %95 = arith.select %94, %77, %80 : vector<16x16xi1>, vector<16x16xf32>
    %c14_i32_45 = arith.constant 14 : i32
    %96 = vector.broadcast %c14_i32_45 : i32 to vector<16x16xi32>
    %97 = arith.cmpi eq, %1, %96 : vector<16x16xi32>
    %98 = arith.select %97, %64, %95 : vector<16x16xi1>, vector<16x16xf32>
    %cst_46 = arith.constant -0.0416666679 : f32
    %99 = vector.broadcast %cst_46 : f32 to vector<16x16xf32>
    %100 = arith.mulf %86, %99 : vector<16x16xf32>
    %cst_47 = arith.constant -0.0416666679 : f32
    %101 = vector.broadcast %cst_47 : f32 to vector<16x16xf32>
    %102 = arith.mulf %86, %101 : vector<16x16xf32>
    %cst_48 = arith.constant -0.0333333351 : f32
    %103 = vector.broadcast %cst_48 : f32 to vector<16x16xf32>
    %104 = arith.mulf %89, %103 : vector<16x16xf32>
    %105 = arith.addf %100, %104 : vector<16x16xf32>
    %cst_49 = arith.constant -0.0666666701 : f32
    %106 = vector.broadcast %cst_49 : f32 to vector<16x16xf32>
    %107 = arith.mulf %89, %106 : vector<16x16xf32>
    %108 = arith.addf %102, %107 : vector<16x16xf32>
    %cst_50 = arith.constant -0.333333343 : f32
    %109 = vector.broadcast %cst_50 : f32 to vector<16x16xf32>
    %110 = arith.mulf %64, %109 : vector<16x16xf32>
    %111 = arith.addf %108, %110 : vector<16x16xf32>
    %cst_51 = arith.constant 0.0333333351 : f32
    %112 = vector.broadcast %cst_51 : f32 to vector<16x16xf32>
    %113 = arith.mulf %92, %112 : vector<16x16xf32>
    %114 = arith.addf %105, %113 : vector<16x16xf32>
    %cst_52 = arith.constant -0.0666666701 : f32
    %115 = vector.broadcast %cst_52 : f32 to vector<16x16xf32>
    %116 = arith.mulf %92, %115 : vector<16x16xf32>
    %117 = arith.addf %111, %116 : vector<16x16xf32>
    %cst_53 = arith.constant 0.0416666679 : f32
    %118 = vector.broadcast %cst_53 : f32 to vector<16x16xf32>
    %119 = arith.mulf %98, %118 : vector<16x16xf32>
    %120 = arith.addf %114, %119 : vector<16x16xf32>
    %cst_54 = arith.constant -0.0416666679 : f32
    %121 = vector.broadcast %cst_54 : f32 to vector<16x16xf32>
    %122 = arith.mulf %98, %121 : vector<16x16xf32>
    %123 = arith.addf %117, %122 : vector<16x16xf32>
    %c2_i32_55 = arith.constant 2 : i32
    %124 = tpu.dynamic_rotate %67 by %c2_i32_55 dim 1 : vector<16x16xf32>, i32 -> vector<16x16xf32>
    %c1_i32_56 = arith.constant 1 : i32
    %125 = tpu.dynamic_rotate %67 by %c1_i32_56 dim 1 : vector<16x16xf32>, i32 -> vector<16x16xf32>
    %c15_i32_57 = arith.constant 15 : i32
    %126 = tpu.dynamic_rotate %67 by %c15_i32_57 dim 1 : vector<16x16xf32>, i32 -> vector<16x16xf32>
    %c14_i32_58 = arith.constant 14 : i32
    %127 = tpu.dynamic_rotate %67 by %c14_i32_58 dim 1 : vector<16x16xf32>, i32 -> vector<16x16xf32>
    %c0_i32_59 = arith.constant 0 : i32
    %128 = vector.broadcast %c0_i32_59 : i32 to vector<16x16xi32>
    %129 = arith.cmpi eq, %1, %128 : vector<16x16xi32>
    %130 = arith.select %129, %127, %124 : vector<16x16xi1>, vector<16x16xf32>
    %c1_i32_60 = arith.constant 1 : i32
    %131 = vector.broadcast %c1_i32_60 : i32 to vector<16x16xi32>
    %132 = arith.cmpi eq, %1, %131 : vector<16x16xi32>
    %133 = arith.select %132, %67, %130 : vector<16x16xi1>, vector<16x16xf32>
    %c0_i32_61 = arith.constant 0 : i32
    %134 = vector.broadcast %c0_i32_61 : i32 to vector<16x16xi32>
    %135 = arith.cmpi eq, %1, %134 : vector<16x16xi32>
    %136 = arith.select %135, %126, %125 : vector<16x16xi1>, vector<16x16xf32>
    %c15_i32_62 = arith.constant 15 : i32
    %137 = vector.broadcast %c15_i32_62 : i32 to vector<16x16xi32>
    %138 = arith.cmpi eq, %1, %137 : vector<16x16xi32>
    %139 = arith.select %138, %125, %126 : vector<16x16xi1>, vector<16x16xf32>
    %c15_i32_63 = arith.constant 15 : i32
    %140 = vector.broadcast %c15_i32_63 : i32 to vector<16x16xi32>
    %141 = arith.cmpi eq, %1, %140 : vector<16x16xi32>
    %142 = arith.select %141, %124, %127 : vector<16x16xi1>, vector<16x16xf32>
    %c14_i32_64 = arith.constant 14 : i32
    %143 = vector.broadcast %c14_i32_64 : i32 to vector<16x16xi32>
    %144 = arith.cmpi eq, %1, %143 : vector<16x16xi32>
    %145 = arith.select %144, %67, %142 : vector<16x16xi1>, vector<16x16xf32>
    %cst_65 = arith.constant -0.0666666701 : f32
    %146 = vector.broadcast %cst_65 : f32 to vector<16x16xf32>
    %147 = arith.mulf %133, %146 : vector<16x16xf32>
    %148 = arith.addf %120, %147 : vector<16x16xf32>
    %cst_66 = arith.constant -0.0333333351 : f32
    %149 = vector.broadcast %cst_66 : f32 to vector<16x16xf32>
    %150 = arith.mulf %133, %149 : vector<16x16xf32>
    %151 = arith.addf %123, %150 : vector<16x16xf32>
    %cst_67 = arith.constant -0.0833333358 : f32
    %152 = vector.broadcast %cst_67 : f32 to vector<16x16xf32>
    %153 = arith.mulf %136, %152 : vector<16x16xf32>
    %154 = arith.addf %148, %153 : vector<16x16xf32>
    %cst_68 = arith.constant -0.0833333358 : f32
    %155 = vector.broadcast %cst_68 : f32 to vector<16x16xf32>
    %156 = arith.mulf %136, %155 : vector<16x16xf32>
    %157 = arith.addf %151, %156 : vector<16x16xf32>
    %cst_69 = arith.constant -0.166666672 : f32
    %158 = vector.broadcast %cst_69 : f32 to vector<16x16xf32>
    %159 = arith.mulf %67, %158 : vector<16x16xf32>
    %160 = arith.addf %157, %159 : vector<16x16xf32>
    %cst_70 = arith.constant 0.0833333358 : f32
    %161 = vector.broadcast %cst_70 : f32 to vector<16x16xf32>
    %162 = arith.mulf %139, %161 : vector<16x16xf32>
    %163 = arith.addf %154, %162 : vector<16x16xf32>
    %cst_71 = arith.constant -0.0833333358 : f32
    %164 = vector.broadcast %cst_71 : f32 to vector<16x16xf32>
    %165 = arith.mulf %139, %164 : vector<16x16xf32>
    %166 = arith.addf %160, %165 : vector<16x16xf32>
    %cst_72 = arith.constant 0.0666666701 : f32
    %167 = vector.broadcast %cst_72 : f32 to vector<16x16xf32>
    %168 = arith.mulf %145, %167 : vector<16x16xf32>
    %169 = arith.addf %163, %168 : vector<16x16xf32>
    %cst_73 = arith.constant -0.0333333351 : f32
    %170 = vector.broadcast %cst_73 : f32 to vector<16x16xf32>
    %171 = arith.mulf %145, %170 : vector<16x16xf32>
    %172 = arith.addf %166, %171 : vector<16x16xf32>
    %c2_i32_74 = arith.constant 2 : i32
    %173 = tpu.dynamic_rotate %54 by %c2_i32_74 dim 1 : vector<16x16xf32>, i32 -> vector<16x16xf32>
    %c1_i32_75 = arith.constant 1 : i32
    %174 = tpu.dynamic_rotate %54 by %c1_i32_75 dim 1 : vector<16x16xf32>, i32 -> vector<16x16xf32>
    %c15_i32_76 = arith.constant 15 : i32
    %175 = tpu.dynamic_rotate %54 by %c15_i32_76 dim 1 : vector<16x16xf32>, i32 -> vector<16x16xf32>
    %c14_i32_77 = arith.constant 14 : i32
    %176 = tpu.dynamic_rotate %54 by %c14_i32_77 dim 1 : vector<16x16xf32>, i32 -> vector<16x16xf32>
    %c0_i32_78 = arith.constant 0 : i32
    %177 = vector.broadcast %c0_i32_78 : i32 to vector<16x16xi32>
    %178 = arith.cmpi eq, %1, %177 : vector<16x16xi32>
    %179 = arith.select %178, %176, %173 : vector<16x16xi1>, vector<16x16xf32>
    %c1_i32_79 = arith.constant 1 : i32
    %180 = vector.broadcast %c1_i32_79 : i32 to vector<16x16xi32>
    %181 = arith.cmpi eq, %1, %180 : vector<16x16xi32>
    %182 = arith.select %181, %54, %179 : vector<16x16xi1>, vector<16x16xf32>
    %c0_i32_80 = arith.constant 0 : i32
    %183 = vector.broadcast %c0_i32_80 : i32 to vector<16x16xi32>
    %184 = arith.cmpi eq, %1, %183 : vector<16x16xi32>
    %185 = arith.select %184, %175, %174 : vector<16x16xi1>, vector<16x16xf32>
    %c15_i32_81 = arith.constant 15 : i32
    %186 = vector.broadcast %c15_i32_81 : i32 to vector<16x16xi32>
    %187 = arith.cmpi eq, %1, %186 : vector<16x16xi32>
    %188 = arith.select %187, %174, %175 : vector<16x16xi1>, vector<16x16xf32>
    %c15_i32_82 = arith.constant 15 : i32
    %189 = vector.broadcast %c15_i32_82 : i32 to vector<16x16xi32>
    %190 = arith.cmpi eq, %1, %189 : vector<16x16xi32>
    %191 = arith.select %190, %173, %176 : vector<16x16xi1>, vector<16x16xf32>
    %c14_i32_83 = arith.constant 14 : i32
    %192 = vector.broadcast %c14_i32_83 : i32 to vector<16x16xi32>
    %193 = arith.cmpi eq, %1, %192 : vector<16x16xi32>
    %194 = arith.select %193, %54, %191 : vector<16x16xi1>, vector<16x16xf32>
    %cst_84 = arith.constant -0.333333343 : f32
    %195 = vector.broadcast %cst_84 : f32 to vector<16x16xf32>
    %196 = arith.mulf %182, %195 : vector<16x16xf32>
    %197 = arith.addf %169, %196 : vector<16x16xf32>
    %cst_85 = arith.constant -0.166666672 : f32
    %198 = vector.broadcast %cst_85 : f32 to vector<16x16xf32>
    %199 = arith.mulf %185, %198 : vector<16x16xf32>
    %200 = arith.addf %197, %199 : vector<16x16xf32>
    %cst_86 = arith.constant 0.166666672 : f32
    %201 = vector.broadcast %cst_86 : f32 to vector<16x16xf32>
    %202 = arith.mulf %188, %201 : vector<16x16xf32>
    %203 = arith.addf %200, %202 : vector<16x16xf32>
    %cst_87 = arith.constant 0.333333343 : f32
    %204 = vector.broadcast %cst_87 : f32 to vector<16x16xf32>
    %205 = arith.mulf %194, %204 : vector<16x16xf32>
    %206 = arith.addf %203, %205 : vector<16x16xf32>
    %c2_i32_88 = arith.constant 2 : i32
    %207 = tpu.dynamic_rotate %70 by %c2_i32_88 dim 1 : vector<16x16xf32>, i32 -> vector<16x16xf32>
    %c1_i32_89 = arith.constant 1 : i32
    %208 = tpu.dynamic_rotate %70 by %c1_i32_89 dim 1 : vector<16x16xf32>, i32 -> vector<16x16xf32>
    %c15_i32_90 = arith.constant 15 : i32
    %209 = tpu.dynamic_rotate %70 by %c15_i32_90 dim 1 : vector<16x16xf32>, i32 -> vector<16x16xf32>
    %c14_i32_91 = arith.constant 14 : i32
    %210 = tpu.dynamic_rotate %70 by %c14_i32_91 dim 1 : vector<16x16xf32>, i32 -> vector<16x16xf32>
    %c0_i32_92 = arith.constant 0 : i32
    %211 = vector.broadcast %c0_i32_92 : i32 to vector<16x16xi32>
    %212 = arith.cmpi eq, %1, %211 : vector<16x16xi32>
    %213 = arith.select %212, %210, %207 : vector<16x16xi1>, vector<16x16xf32>
    %c1_i32_93 = arith.constant 1 : i32
    %214 = vector.broadcast %c1_i32_93 : i32 to vector<16x16xi32>
    %215 = arith.cmpi eq, %1, %214 : vector<16x16xi32>
    %216 = arith.select %215, %70, %213 : vector<16x16xi1>, vector<16x16xf32>
    %c0_i32_94 = arith.constant 0 : i32
    %217 = vector.broadcast %c0_i32_94 : i32 to vector<16x16xi32>
    %218 = arith.cmpi eq, %1, %217 : vector<16x16xi32>
    %219 = arith.select %218, %209, %208 : vector<16x16xi1>, vector<16x16xf32>
    %c15_i32_95 = arith.constant 15 : i32
    %220 = vector.broadcast %c15_i32_95 : i32 to vector<16x16xi32>
    %221 = arith.cmpi eq, %1, %220 : vector<16x16xi32>
    %222 = arith.select %221, %208, %209 : vector<16x16xi1>, vector<16x16xf32>
    %c15_i32_96 = arith.constant 15 : i32
    %223 = vector.broadcast %c15_i32_96 : i32 to vector<16x16xi32>
    %224 = arith.cmpi eq, %1, %223 : vector<16x16xi32>
    %225 = arith.select %224, %207, %210 : vector<16x16xi1>, vector<16x16xf32>
    %c14_i32_97 = arith.constant 14 : i32
    %226 = vector.broadcast %c14_i32_97 : i32 to vector<16x16xi32>
    %227 = arith.cmpi eq, %1, %226 : vector<16x16xi32>
    %228 = arith.select %227, %70, %225 : vector<16x16xi1>, vector<16x16xf32>
    %cst_98 = arith.constant -0.0666666701 : f32
    %229 = vector.broadcast %cst_98 : f32 to vector<16x16xf32>
    %230 = arith.mulf %216, %229 : vector<16x16xf32>
    %231 = arith.addf %206, %230 : vector<16x16xf32>
    %cst_99 = arith.constant 0.0333333351 : f32
    %232 = vector.broadcast %cst_99 : f32 to vector<16x16xf32>
    %233 = arith.mulf %216, %232 : vector<16x16xf32>
    %234 = arith.addf %172, %233 : vector<16x16xf32>
    %cst_100 = arith.constant -0.0833333358 : f32
    %235 = vector.broadcast %cst_100 : f32 to vector<16x16xf32>
    %236 = arith.mulf %219, %235 : vector<16x16xf32>
    %237 = arith.addf %231, %236 : vector<16x16xf32>
    %cst_101 = arith.constant 0.0833333358 : f32
    %238 = vector.broadcast %cst_101 : f32 to vector<16x16xf32>
    %239 = arith.mulf %219, %238 : vector<16x16xf32>
    %240 = arith.addf %234, %239 : vector<16x16xf32>
    %cst_102 = arith.constant 0.166666672 : f32
    %241 = vector.broadcast %cst_102 : f32 to vector<16x16xf32>
    %242 = arith.mulf %70, %241 : vector<16x16xf32>
    %243 = arith.addf %240, %242 : vector<16x16xf32>
    %cst_103 = arith.constant 0.0833333358 : f32
    %244 = vector.broadcast %cst_103 : f32 to vector<16x16xf32>
    %245 = arith.mulf %222, %244 : vector<16x16xf32>
    %246 = arith.addf %237, %245 : vector<16x16xf32>
    %cst_104 = arith.constant 0.0833333358 : f32
    %247 = vector.broadcast %cst_104 : f32 to vector<16x16xf32>
    %248 = arith.mulf %222, %247 : vector<16x16xf32>
    %249 = arith.addf %243, %248 : vector<16x16xf32>
    %cst_105 = arith.constant 0.0666666701 : f32
    %250 = vector.broadcast %cst_105 : f32 to vector<16x16xf32>
    %251 = arith.mulf %228, %250 : vector<16x16xf32>
    %252 = arith.addf %246, %251 : vector<16x16xf32>
    %cst_106 = arith.constant 0.0333333351 : f32
    %253 = vector.broadcast %cst_106 : f32 to vector<16x16xf32>
    %254 = arith.mulf %228, %253 : vector<16x16xf32>
    %255 = arith.addf %249, %254 : vector<16x16xf32>
    %c2_i32_107 = arith.constant 2 : i32
    %256 = tpu.dynamic_rotate %76 by %c2_i32_107 dim 1 : vector<16x16xf32>, i32 -> vector<16x16xf32>
    %c1_i32_108 = arith.constant 1 : i32
    %257 = tpu.dynamic_rotate %76 by %c1_i32_108 dim 1 : vector<16x16xf32>, i32 -> vector<16x16xf32>
    %c15_i32_109 = arith.constant 15 : i32
    %258 = tpu.dynamic_rotate %76 by %c15_i32_109 dim 1 : vector<16x16xf32>, i32 -> vector<16x16xf32>
    %c14_i32_110 = arith.constant 14 : i32
    %259 = tpu.dynamic_rotate %76 by %c14_i32_110 dim 1 : vector<16x16xf32>, i32 -> vector<16x16xf32>
    %c0_i32_111 = arith.constant 0 : i32
    %260 = vector.broadcast %c0_i32_111 : i32 to vector<16x16xi32>
    %261 = arith.cmpi eq, %1, %260 : vector<16x16xi32>
    %262 = arith.select %261, %259, %256 : vector<16x16xi1>, vector<16x16xf32>
    %c1_i32_112 = arith.constant 1 : i32
    %263 = vector.broadcast %c1_i32_112 : i32 to vector<16x16xi32>
    %264 = arith.cmpi eq, %1, %263 : vector<16x16xi32>
    %265 = arith.select %264, %76, %262 : vector<16x16xi1>, vector<16x16xf32>
    %c0_i32_113 = arith.constant 0 : i32
    %266 = vector.broadcast %c0_i32_113 : i32 to vector<16x16xi32>
    %267 = arith.cmpi eq, %1, %266 : vector<16x16xi32>
    %268 = arith.select %267, %258, %257 : vector<16x16xi1>, vector<16x16xf32>
    %c15_i32_114 = arith.constant 15 : i32
    %269 = vector.broadcast %c15_i32_114 : i32 to vector<16x16xi32>
    %270 = arith.cmpi eq, %1, %269 : vector<16x16xi32>
    %271 = arith.select %270, %257, %258 : vector<16x16xi1>, vector<16x16xf32>
    %c15_i32_115 = arith.constant 15 : i32
    %272 = vector.broadcast %c15_i32_115 : i32 to vector<16x16xi32>
    %273 = arith.cmpi eq, %1, %272 : vector<16x16xi32>
    %274 = arith.select %273, %256, %259 : vector<16x16xi1>, vector<16x16xf32>
    %c14_i32_116 = arith.constant 14 : i32
    %275 = vector.broadcast %c14_i32_116 : i32 to vector<16x16xi32>
    %276 = arith.cmpi eq, %1, %275 : vector<16x16xi32>
    %277 = arith.select %276, %76, %274 : vector<16x16xi1>, vector<16x16xf32>
    %cst_117 = arith.constant -0.0416666679 : f32
    %278 = vector.broadcast %cst_117 : f32 to vector<16x16xf32>
    %279 = arith.mulf %265, %278 : vector<16x16xf32>
    %280 = arith.addf %252, %279 : vector<16x16xf32>
    %cst_118 = arith.constant 0.0416666679 : f32
    %281 = vector.broadcast %cst_118 : f32 to vector<16x16xf32>
    %282 = arith.mulf %265, %281 : vector<16x16xf32>
    %283 = arith.addf %255, %282 : vector<16x16xf32>
    %cst_119 = arith.constant -0.0333333351 : f32
    %284 = vector.broadcast %cst_119 : f32 to vector<16x16xf32>
    %285 = arith.mulf %268, %284 : vector<16x16xf32>
    %286 = arith.addf %280, %285 : vector<16x16xf32>
    %cst_120 = arith.constant 0.0666666701 : f32
    %287 = vector.broadcast %cst_120 : f32 to vector<16x16xf32>
    %288 = arith.mulf %268, %287 : vector<16x16xf32>
    %289 = arith.addf %283, %288 : vector<16x16xf32>
    %cst_121 = arith.constant 0.333333343 : f32
    %290 = vector.broadcast %cst_121 : f32 to vector<16x16xf32>
    %291 = arith.mulf %76, %290 : vector<16x16xf32>
    %292 = arith.addf %289, %291 : vector<16x16xf32>
    %cst_122 = arith.constant 0.0333333351 : f32
    %293 = vector.broadcast %cst_122 : f32 to vector<16x16xf32>
    %294 = arith.mulf %271, %293 : vector<16x16xf32>
    %295 = arith.addf %286, %294 : vector<16x16xf32>
    %cst_123 = arith.constant 0.0666666701 : f32
    %296 = vector.broadcast %cst_123 : f32 to vector<16x16xf32>
    %297 = arith.mulf %271, %296 : vector<16x16xf32>
    %298 = arith.addf %292, %297 : vector<16x16xf32>
    %cst_124 = arith.constant 0.0416666679 : f32
    %299 = vector.broadcast %cst_124 : f32 to vector<16x16xf32>
    %300 = arith.mulf %277, %299 : vector<16x16xf32>
    %301 = arith.addf %295, %300 : vector<16x16xf32>
    %cst_125 = arith.constant 0.0416666679 : f32
    %302 = vector.broadcast %cst_125 : f32 to vector<16x16xf32>
    %303 = arith.mulf %277, %302 : vector<16x16xf32>
    %304 = arith.addf %298, %303 : vector<16x16xf32>
    %305 = arith.mulf %301, %301 : vector<16x16xf32>
    %306 = arith.mulf %304, %304 : vector<16x16xf32>
    %307 = arith.addf %305, %306 : vector<16x16xf32>
    %308 = math.sqrt %307 : vector<16x16xf32>
    %cst_126 = arith.constant 9.99999974E-6 : f32
    %309 = vector.broadcast %cst_126 : f32 to vector<16x16xf32>
    %310 = arith.addf %304, %309 : vector<16x16xf32>
    %311 = math.absf %310 : vector<16x16xf32>
    %312 = math.absf %301 : vector<16x16xf32>
    %cst_127 = arith.constant 0.414213568 : f32
    %313 = vector.broadcast %cst_127 : f32 to vector<16x16xf32>
    %314 = arith.mulf %311, %313 : vector<16x16xf32>
    %315 = arith.cmpf ole, %312, %314 : vector<16x16xf32>
    %cst_128 = arith.constant 0.414213568 : f32
    %316 = vector.broadcast %cst_128 : f32 to vector<16x16xf32>
    %317 = arith.mulf %312, %316 : vector<16x16xf32>
    %318 = arith.cmpf olt, %311, %317 : vector<16x16xf32>
    %c2_i32_129 = arith.constant 2 : i32
    %c1_i32_130 = arith.constant 1 : i32
    %319 = vector.broadcast %c2_i32_129 : i32 to vector<16x16xi32>
    %320 = vector.broadcast %c1_i32_130 : i32 to vector<16x16xi32>
    %321 = arith.select %318, %319, %320 : vector<16x16xi1>, vector<16x16xi32>
    %c0_i32_131 = arith.constant 0 : i32
    %322 = vector.broadcast %c0_i32_131 : i32 to vector<16x16xi32>
    %323 = arith.select %315, %322, %321 : vector<16x16xi1>, vector<16x16xi32>
    %cst_132 = arith.constant 0.000000e+00 : f32
    %324 = vector.broadcast %cst_132 : f32 to vector<16x16xf32>
    %325 = arith.cmpf oge, %301, %324 : vector<16x16xf32>
    %c0_i32_133 = arith.constant 0 : i32
    %326 = vector.broadcast %c0_i32_133 : i32 to vector<16x16xi32>
    %327 = arith.subi %326, %323 : vector<16x16xi32>
    %328 = arith.select %325, %323, %327 : vector<16x16xi1>, vector<16x16xi32>
    %cst_134 = arith.constant 0.000000e+00 : f32
    %329 = vector.broadcast %cst_134 : f32 to vector<16x16xf32>
    %330 = arith.cmpf oge, %301, %329 : vector<16x16xf32>
    %c4_i32 = arith.constant 4 : i32
    %331 = vector.broadcast %c4_i32 : i32 to vector<16x16xi32>
    %332 = arith.subi %331, %323 : vector<16x16xi32>
    %c4_i32_135 = arith.constant 4 : i32
    %333 = vector.broadcast %c4_i32_135 : i32 to vector<16x16xi32>
    %334 = arith.subi %323, %333 : vector<16x16xi32>
    %335 = arith.select %330, %332, %334 : vector<16x16xi1>, vector<16x16xi32>
    %cst_136 = arith.constant 0.000000e+00 : f32
    %336 = vector.broadcast %cst_136 : f32 to vector<16x16xf32>
    %337 = arith.cmpf oge, %310, %336 : vector<16x16xf32>
    %338 = arith.select %337, %328, %335 : vector<16x16xi1>, vector<16x16xi32>
    %c4_i32_137 = arith.constant 4 : i32
    %339 = vector.broadcast %c4_i32_137 : i32 to vector<16x16xi32>
    %340 = arith.addi %338, %339 : vector<16x16xi32>
    %c3_i32 = arith.constant 3 : i32
    %341 = vector.broadcast %c3_i32 : i32 to vector<16x16xi32>
    %342 = arith.andi %340, %341 : vector<16x16xi32>
    %c1_i32_138 = arith.constant 1 : i32
    %343 = tpu.dynamic_rotate %308 by %c1_i32_138 dim 0 : vector<16x16xf32>, i32 -> vector<16x16xf32>
    %c0_i32_139 = arith.constant 0 : i32
    %344 = vector.broadcast %c0_i32_139 : i32 to vector<16x16xi32>
    %345 = arith.cmpi eq, %0, %344 : vector<16x16xi32>
    %cst_140 = arith.constant 0.000000e+00 : f32
    %346 = vector.broadcast %cst_140 : f32 to vector<16x16xf32>
    %347 = arith.select %345, %346, %343 : vector<16x16xi1>, vector<16x16xf32>
    %c15_i32_141 = arith.constant 15 : i32
    %348 = tpu.dynamic_rotate %308 by %c15_i32_141 dim 0 : vector<16x16xf32>, i32 -> vector<16x16xf32>
    %c15_i32_142 = arith.constant 15 : i32
    %349 = vector.broadcast %c15_i32_142 : i32 to vector<16x16xi32>
    %350 = arith.cmpi eq, %0, %349 : vector<16x16xi32>
    %cst_143 = arith.constant 0.000000e+00 : f32
    %351 = vector.broadcast %cst_143 : f32 to vector<16x16xf32>
    %352 = arith.select %350, %351, %348 : vector<16x16xi1>, vector<16x16xf32>
    %c0_i32_144 = arith.constant 0 : i32
    %353 = vector.broadcast %c0_i32_144 : i32 to vector<16x16xi32>
    %354 = arith.cmpi eq, %342, %353 : vector<16x16xi32>
    %355 = arith.cmpf olt, %308, %347 : vector<16x16xf32>
    %356 = arith.cmpf olt, %308, %352 : vector<16x16xf32>
    %357 = arith.ori %355, %356 : vector<16x16xi1>
    %358 = arith.andi %354, %357 : vector<16x16xi1>
    %c1_i32_145 = arith.constant 1 : i32
    %359 = vector.broadcast %c1_i32_145 : i32 to vector<16x16xi32>
    %360 = arith.cmpi eq, %342, %359 : vector<16x16xi32>
    %c1_i32_146 = arith.constant 1 : i32
    %361 = tpu.dynamic_rotate %347 by %c1_i32_146 dim 1 : vector<16x16xf32>, i32 -> vector<16x16xf32>
    %c0_i32_147 = arith.constant 0 : i32
    %362 = vector.broadcast %c0_i32_147 : i32 to vector<16x16xi32>
    %363 = arith.cmpi eq, %1, %362 : vector<16x16xi32>
    %cst_148 = arith.constant 0.000000e+00 : f32
    %364 = vector.broadcast %cst_148 : f32 to vector<16x16xf32>
    %365 = arith.select %363, %364, %361 : vector<16x16xi1>, vector<16x16xf32>
    %366 = arith.cmpf olt, %308, %365 : vector<16x16xf32>
    %c15_i32_149 = arith.constant 15 : i32
    %367 = tpu.dynamic_rotate %352 by %c15_i32_149 dim 1 : vector<16x16xf32>, i32 -> vector<16x16xf32>
    %c15_i32_150 = arith.constant 15 : i32
    %368 = vector.broadcast %c15_i32_150 : i32 to vector<16x16xi32>
    %369 = arith.cmpi eq, %1, %368 : vector<16x16xi32>
    %cst_151 = arith.constant 0.000000e+00 : f32
    %370 = vector.broadcast %cst_151 : f32 to vector<16x16xf32>
    %371 = arith.select %369, %370, %367 : vector<16x16xi1>, vector<16x16xf32>
    %372 = arith.cmpf olt, %308, %371 : vector<16x16xf32>
    %373 = arith.ori %366, %372 : vector<16x16xi1>
    %374 = arith.andi %360, %373 : vector<16x16xi1>
    %375 = arith.ori %358, %374 : vector<16x16xi1>
    %c2_i32_152 = arith.constant 2 : i32
    %376 = vector.broadcast %c2_i32_152 : i32 to vector<16x16xi32>
    %377 = arith.cmpi eq, %342, %376 : vector<16x16xi32>
    %c1_i32_153 = arith.constant 1 : i32
    %378 = tpu.dynamic_rotate %308 by %c1_i32_153 dim 1 : vector<16x16xf32>, i32 -> vector<16x16xf32>
    %c0_i32_154 = arith.constant 0 : i32
    %379 = vector.broadcast %c0_i32_154 : i32 to vector<16x16xi32>
    %380 = arith.cmpi eq, %1, %379 : vector<16x16xi32>
    %cst_155 = arith.constant 0.000000e+00 : f32
    %381 = vector.broadcast %cst_155 : f32 to vector<16x16xf32>
    %382 = arith.select %380, %381, %378 : vector<16x16xi1>, vector<16x16xf32>
    %383 = arith.cmpf olt, %308, %382 : vector<16x16xf32>
    %c15_i32_156 = arith.constant 15 : i32
    %384 = tpu.dynamic_rotate %308 by %c15_i32_156 dim 1 : vector<16x16xf32>, i32 -> vector<16x16xf32>
    %c15_i32_157 = arith.constant 15 : i32
    %385 = vector.broadcast %c15_i32_157 : i32 to vector<16x16xi32>
    %386 = arith.cmpi eq, %1, %385 : vector<16x16xi32>
    %cst_158 = arith.constant 0.000000e+00 : f32
    %387 = vector.broadcast %cst_158 : f32 to vector<16x16xf32>
    %388 = arith.select %386, %387, %384 : vector<16x16xi1>, vector<16x16xf32>
    %389 = arith.cmpf olt, %308, %388 : vector<16x16xf32>
    %390 = arith.ori %383, %389 : vector<16x16xi1>
    %391 = arith.andi %377, %390 : vector<16x16xi1>
    %392 = arith.ori %375, %391 : vector<16x16xi1>
    %c3_i32_159 = arith.constant 3 : i32
    %393 = vector.broadcast %c3_i32_159 : i32 to vector<16x16xi32>
    %394 = arith.cmpi eq, %342, %393 : vector<16x16xi32>
    %c15_i32_160 = arith.constant 15 : i32
    %395 = tpu.dynamic_rotate %347 by %c15_i32_160 dim 1 : vector<16x16xf32>, i32 -> vector<16x16xf32>
    %c15_i32_161 = arith.constant 15 : i32
    %396 = vector.broadcast %c15_i32_161 : i32 to vector<16x16xi32>
    %397 = arith.cmpi eq, %1, %396 : vector<16x16xi32>
    %cst_162 = arith.constant 0.000000e+00 : f32
    %398 = vector.broadcast %cst_162 : f32 to vector<16x16xf32>
    %399 = arith.select %397, %398, %395 : vector<16x16xi1>, vector<16x16xf32>
    %400 = arith.cmpf olt, %308, %399 : vector<16x16xf32>
    %c1_i32_163 = arith.constant 1 : i32
    %401 = tpu.dynamic_rotate %352 by %c1_i32_163 dim 1 : vector<16x16xf32>, i32 -> vector<16x16xf32>
    %c0_i32_164 = arith.constant 0 : i32
    %402 = vector.broadcast %c0_i32_164 : i32 to vector<16x16xi32>
    %403 = arith.cmpi eq, %1, %402 : vector<16x16xi32>
    %cst_165 = arith.constant 0.000000e+00 : f32
    %404 = vector.broadcast %cst_165 : f32 to vector<16x16xf32>
    %405 = arith.select %403, %404, %401 : vector<16x16xi1>, vector<16x16xf32>
    %406 = arith.cmpf olt, %308, %405 : vector<16x16xf32>
    %407 = arith.ori %400, %406 : vector<16x16xi1>
    %408 = arith.andi %394, %407 : vector<16x16xi1>
    %409 = arith.ori %392, %408 : vector<16x16xi1>
    %cst_166 = arith.constant 0.000000e+00 : f32
    %410 = vector.broadcast %cst_166 : f32 to vector<16x16xf32>
    %411 = arith.select %409, %410, %308 : vector<16x16xi1>, vector<16x16xf32>
    %cst_167 = arith.constant 5.000000e-02 : f32
    %412 = vector.broadcast %cst_167 : f32 to vector<16x16xf32>
    %413 = arith.cmpf olt, %411, %412 : vector<16x16xf32>
    %cst_168 = arith.constant 0.000000e+00 : f32
    %414 = vector.broadcast %cst_168 : f32 to vector<16x16xf32>
    %415 = arith.select %413, %414, %411 : vector<16x16xi1>, vector<16x16xf32>
    %cst_169 = arith.constant 2.000000e-01 : f32
    %416 = vector.broadcast %cst_169 : f32 to vector<16x16xf32>
    %417 = arith.cmpf olt, %415, %416 : vector<16x16xf32>
    %cst_170 = arith.constant 5.000000e-02 : f32
    %418 = vector.broadcast %cst_170 : f32 to vector<16x16xf32>
    %419 = arith.cmpf ogt, %415, %418 : vector<16x16xf32>
    %420 = arith.andi %417, %419 : vector<16x16xi1>
    %cst_171 = arith.constant 2.000000e-01 : f32
    %421 = vector.broadcast %cst_171 : f32 to vector<16x16xf32>
    %422 = arith.cmpf ogt, %415, %421 : vector<16x16xf32>
    %423 = arith.extui %422 : vector<16x16xi1> to vector<16x16xi32>
    %424 = arith.sitofp %423 : vector<16x16xi32> to vector<16x16xf32>
    %c1_i32_172 = arith.constant 1 : i32
    %425 = tpu.dynamic_rotate %424 by %c1_i32_172 dim 1 : vector<16x16xf32>, i32 -> vector<16x16xf32>
    %c15_i32_173 = arith.constant 15 : i32
    %426 = tpu.dynamic_rotate %424 by %c15_i32_173 dim 1 : vector<16x16xf32>, i32 -> vector<16x16xf32>
    %c0_i32_174 = arith.constant 0 : i32
    %427 = vector.broadcast %c0_i32_174 : i32 to vector<16x16xi32>
    %428 = arith.cmpi eq, %1, %427 : vector<16x16xi32>
    %429 = arith.select %428, %426, %425 : vector<16x16xi1>, vector<16x16xf32>
    %c15_i32_175 = arith.constant 15 : i32
    %430 = vector.broadcast %c15_i32_175 : i32 to vector<16x16xi32>
    %431 = arith.cmpi eq, %1, %430 : vector<16x16xi32>
    %432 = arith.select %431, %425, %426 : vector<16x16xi1>, vector<16x16xf32>
    %433 = arith.addf %429, %424 : vector<16x16xf32>
    %434 = arith.addf %433, %432 : vector<16x16xf32>
    %c1_i32_176 = arith.constant 1 : i32
    %435 = tpu.dynamic_rotate %434 by %c1_i32_176 dim 0 : vector<16x16xf32>, i32 -> vector<16x16xf32>
    %c15_i32_177 = arith.constant 15 : i32
    %436 = tpu.dynamic_rotate %434 by %c15_i32_177 dim 0 : vector<16x16xf32>, i32 -> vector<16x16xf32>
    %c0_i32_178 = arith.constant 0 : i32
    %437 = vector.broadcast %c0_i32_178 : i32 to vector<16x16xi32>
    %438 = arith.cmpi eq, %0, %437 : vector<16x16xi32>
    %439 = arith.select %438, %436, %435 : vector<16x16xi1>, vector<16x16xf32>
    %c15_i32_179 = arith.constant 15 : i32
    %440 = vector.broadcast %c15_i32_179 : i32 to vector<16x16xi32>
    %441 = arith.cmpi eq, %0, %440 : vector<16x16xi32>
    %442 = arith.select %441, %435, %436 : vector<16x16xi1>, vector<16x16xf32>
    %443 = arith.addf %439, %434 : vector<16x16xf32>
    %444 = arith.addf %443, %442 : vector<16x16xf32>
    %cst_180 = arith.constant 0.000000e+00 : f32
    %445 = vector.broadcast %cst_180 : f32 to vector<16x16xf32>
    %446 = arith.cmpf ogt, %444, %445 : vector<16x16xf32>
    %447 = arith.andi %420, %446 : vector<16x16xi1>
    %cst_181 = arith.constant dense<true> : vector<16x16xi1>
    %448 = arith.xori %447, %cst_181 : vector<16x16xi1>
    %cst_182 = arith.constant dense<true> : vector<16x16xi1>
    %449 = arith.xori %422, %cst_182 : vector<16x16xi1>
    %450 = arith.andi %448, %449 : vector<16x16xi1>
    %cst_183 = arith.constant 0.000000e+00 : f32
    %451 = vector.broadcast %cst_183 : f32 to vector<16x16xf32>
    %452 = arith.select %450, %451, %415 : vector<16x16xi1>, vector<16x16xf32>
    %c0_184 = arith.constant 0 : index
    %c0_185 = arith.constant 0 : index
    %c0_186 = arith.constant 0 : index
    %c0_187 = arith.constant 0 : index
    %453 = vector.load %arg3[%c0_184, %c0_185, %c0_186, %c0_187] : memref<1x1x16x16xf32, #tpu.memory_space<vmem>>, vector<1x1x16x16xf32>
    %454 = vector.shape_cast %453 : vector<1x1x16x16xf32> to vector<16x16xf32>
    %455 = vector.shape_cast %452 : vector<16x16xf32> to vector<1x1x16x16xf32>
    tpu.vector_store %arg3[%c0_184, %c0_185, %c0_186, %c0_187], %455 {strides = array<i32>} : memref<1x1x16x16xf32, #tpu.memory_space<vmem>>, vector<1x1x16x16xf32>,
    return
  }
  func.func @transform_0(%arg0: i32) -> (i32, i32, i32, i32) {
    %c0_i32 = arith.constant 0 : i32
    %c0_i32_0 = arith.constant 0 : i32
    %c0_i32_1 = arith.constant 0 : i32
    %c0_i32_2 = arith.constant 0 : i32
    return %arg0, %c0_i32, %c0_i32_0, %c0_i32_1 : i32, i32, i32, i32
  }
  func.func @transform_1(%arg0: i32) -> (i32, i32) {
    %c0_i32 = arith.constant 0 : i32
    %c0_i32_0 = arith.constant 0 : i32
    %c0_i32_1 = arith.constant 0 : i32
    return %c0_i32, %c0_i32_0 : i32, i32
  }
  func.func @transform_2(%arg0: i32) -> (i32, i32, i32, i32) {
    %c0_i32 = arith.constant 0 : i32
    %c0_i32_0 = arith.constant 0 : i32
    %c0_i32_1 = arith.constant 0 : i32
    %c0_i32_2 = arith.constant 0 : i32
    return %arg0, %c0_i32, %c0_i32_0, %c0_i32_1 : i32, i32, i32, i32
  }
}

</mosaic_0001>

<llo_original>
// kernel: canny_pallas.1
$region0: #{canny_pallas.1}
  #allocation0 [shape = 'u32[]', space=smem, size = 0x4, offset = 0x4, fixed_abs, tag = 'smem constant byte address 0x4 - core index']
  #allocation1 [shape = 'u32[72,128]{1,0:T(1,128)}', space=vmem, size = 0x9000, scoped, tag = 'internal scratch']
  #allocation2 [shape = 'f32[1,1]{1,0:T(1,128)S(6)}', space=smem, size = 0x200, scoped, tag = 'scoped memory for canny_pallas.1']
  %s0 = inlined_call_operand.vmem [shape: f32[2,4,16,16], index: 0, kind: input, shape index: {}]
  %s1 = inlined_call_operand.<no memory space> [shape: f32[1,1], index: 1, kind: input, shape index: {}]
  %s2 = inlined_call_operand.hbm [shape: f32[2,1,16,16], index: 2, kind: output, shape index: {}]
  %s3 = sld [smem:[#allocation0]]
  $region41: #{canny_pallas.1} parent=0
    _
  %s5 = ssub.s32 1, %s3
  %s6 = scalar_select 0, %s5, %s3
  %7 = sst [smem:[#allocation2]] %s1
  $region1: #{canny_pallas.1} parent=0
    #allocation3 [shape = 'u8[16384]{0}', space=vmem, size = 0x4000, scoped, tag = 'output window, operand 0']
    #allocation4 [shape = 's32[2]{0}', space=sflag, size = 0x8, scoped, tag = 'scoped memory for canny_pallas.1']
    %8 = vsyncpa [#allocation4], 0
    %s9 = scalar_lea.sflag [#allocation4], 1
    %10 = vsyncpa %s9, 0
    loop: start=0, step=1, limit=4
    $region2: #{canny_pallas.1} parent=1 // loop_pre_header
      _
    $region3: #{canny_pallas.1} parent=1 // loop_header
      %s12 = sphi 0, %s16
      %p13 = scmp.ge.s32.totalorder %s12, 4
      %s22 = sphi 0, %s24
      %s25 = sphi 0, %s22
      %s26 = sphi 0, %s25
      %s42 = sphi 0, %s26
      %s46 = sphi 0, %s46
      %s48 = sphi 0, %s46
      %s49 = sphi 0, %s48
      %s63 = sphi 0, %s49
      %s69 = sphi 0, %s71
      %s72 = sphi 0, %s69
      %s73 = sphi 0, %s72
      %s89 = sphi 0, %s73
    $region4: #{canny_pallas.1} parent=1 // loop_header_branch
      %15 = sbr.rel (%p13) target = $region8
    $region5: #{canny_pallas.1} parent=1 // loop_body
      %s17 = ssub.s32 %s12, 1
      %s18 = ssub.s32 %s12, 2
      %s19 = sadd.s32 %s12, 1
      %s20 = ssub.s32 %s12, %s19
      %p21 = scmp.eq.s32.totalorder %s20, 0
      %s23 = sadd.s32 %s22, 1
      %s24 = scalar_select %p21, %s22, %s23
      %p27 = pneg %p21
      %p28 = scmp.eq.s32.totalorder %s12, 1
      %p29 = por %p27, %p28
      %p30 = scmp.ne.s32.totalorder %s22, %s25
      %p31 = scmp.eq.s32.totalorder %s12, 0
      %p32 = por %p30, %p31
      %p33 = scmp.ne.s32.totalorder %s22, %s25
      %p34 = scmp.eq.s32.totalorder %s17, 1
      %p35 = por %p33, %p34
      %p36 = scmp.ne.s32.totalorder %s25, %s26
      %p37 = scmp.eq.s32.totalorder %s17, 0
      %p38 = por %p36, %p37
      %p39 = scmp.ne.s32.totalorder %s25, %s26
      %p40 = scmp.eq.s32.totalorder %s18, 1
      %p41 = por %p39, %p40
      %p43 = scmp.ne.s32.totalorder %s26, %s42
      %p44 = scmp.eq.s32.totalorder %s18, 0
      %p45 = por %p43, %p44
      %s47 = sadd.s32 %s46, 1
      %p50 = scmp.eq.s32.totalorder %s12, 1
      %p51 = scmp.ne.s32.totalorder %s46, %s48
      %p52 = scmp.eq.s32.totalorder %s12, 0
      %p53 = por %p51, %p52
      %p54 = scmp.ne.s32.totalorder %s46, %s48
      %p55 = scmp.eq.s32.totalorder %s17, 1
      %p56 = por %p54, %p55
      %p57 = scmp.ne.s32.totalorder %s48, %s49
      %p58 = scmp.eq.s32.totalorder %s17, 0
      %p59 = por %p57, %p58
      %p60 = scmp.ne.s32.totalorder %s48, %s49
      %p61 = scmp.eq.s32.totalorder %s18, 1
      %p62 = por %p60, %p61
      %p64 = scmp.ne.s32.totalorder %s49, %s63
      %p65 = scmp.eq.s32.totalorder %s18, 0
      %p66 = por %p64, %p65
      %s67 = ssub.s32 %s12, %s19
      %p68 = scmp.eq.s32.totalorder %s67, 0
      %s70 = sadd.s32 %s69, 1
      %s71 = scalar_select %p68, %s69, %s70
      %p74 = pneg %p68
      %p75 = scmp.eq.s32.totalorder %s12, 1
      %p76 = por %p74, %p75
      %p77 = scmp.ne.s32.totalorder %s69, %s72
      %p78 = scmp.eq.s32.totalorder %s12, 0
      %p79 = por %p77, %p78
      %p80 = scmp.ne.s32.totalorder %s69, %s72
      %p81 = scmp.eq.s32.totalorder %s17, 1
      %p82 = por %p80, %p81
      %p83 = scmp.ne.s32.totalorder %s72, %s73
      %p84 = scmp.eq.s32.totalorder %s17, 0
      %p85 = por %p83, %p84
      %p86 = scmp.ne.s32.totalorder %s72, %s73
      %p87 = scmp.eq.s32.totalorder %s18, 1
      %p88 = por %p86, %p87
      %p90 = scmp.ne.s32.totalorder %s73, %s89
      %p91 = scmp.eq.s32.totalorder %s18, 0
      %p92 = por %p90, %p91
      %p93 = scmp.le.s32.totalorder 1, %s12
      %p94 = scmp.lt.s32.totalorder %s12, 3
      %p95 = pnand %p93, %p94
      %p96 = pneg %p95
      // Predicated region
      $region9: #{canny_pallas.1} parent=5 // pred_check
        _
      $region10: #{canny_pallas.1} parent=5 // pred_check_branch
        %98 = sbr.rel (%p95) target = $region12
      $region11: #{canny_pallas.1} parent=5 // pred_region
        %s99 = ssub.s32 %s12, 1
        // Predicated region
        $region13: #{canny_pallas.1} parent=11 // pred_check
          %p100 = pneg %p59
        $region14: #{canny_pallas.1} parent=11 // pred_check_branch
          %102 = sbr.rel (%p100) target = $region16
        $region15: #{canny_pallas.1} parent=11 // pred_region
          _
        $region16: #{canny_pallas.1} parent=11 // pred_fallthru
          _
      $region12: #{canny_pallas.1} parent=5 // pred_fallthru
        _
      %p103 = scmp.lt.s32.totalorder %s12, 2
      // Predicated region
      $region17: #{canny_pallas.1} parent=5 // pred_check
        %p104 = pneg %p103
      $region18: #{canny_pallas.1} parent=5 // pred_check_branch
        %106 = sbr.rel (%p104) target = $region20
      $region19: #{canny_pallas.1} parent=5 // pred_region
        // Predicated region
        $region21: #{canny_pallas.1} parent=19 // pred_check
          %p107 = pneg %p32
        $region22: #{canny_pallas.1} parent=19 // pred_check_branch
          %109 = sbr.rel (%p107) target = $region24
        $region23: #{canny_pallas.1} parent=19 // pred_region
          %p110 = scmp.lt.s32.totalorder %s12, 1
          %s111 = scalar_select %p110, %s12, 1
          %s112 = smul.addr %s111, 8
          %s113 = smul.addr %s112, 8
          %s114 = scalar_lea.vmem %s0, %s113
        $region24: #{canny_pallas.1} parent=19 // pred_fallthru
          _
      $region20: #{canny_pallas.1} parent=5 // pred_fallthru
        _
      %p115 = scmp.le.s32.totalorder 1, %s12
      %p116 = scmp.lt.s32.totalorder %s12, 3
      %p117 = pnand %p115, %p116
      %p118 = pneg %p117
      // Predicated region
      $region25: #{canny_pallas.1} parent=5 // pred_check
        _
      $region26: #{canny_pallas.1} parent=5 // pred_check_branch
        %120 = sbr.rel (%p117) target = $region28
      $region27: #{canny_pallas.1} parent=5 // pred_region
        %s121 = ssub.s32 %s12, 1
        %p122 = scmp.lt.s32.totalorder %s17, 1
        %s123 = scalar_select %p122, %s17, 1
        %s124 = smul.addr %s123, 8
        %s125 = smul.addr %s124, 8
        %s126 = scalar_lea.vmem %s0, %s125
        %p127 = pneg %p38
        %p128 = pneg %p35
        %p129 = pneg %p59
        %p130 = pneg %p56
        %p131 = pneg %p85
        %p132 = pneg %p82
        %s133 = sand.u32 %s72, 1
        %s134 = scalar_lea.sflag [#allocation4], %s133
        %s135 = sand.u32 %s72, 1
        %s136 = smul.addr %s135, 16
        %s137 = scalar_lea.vmem [#allocation3], %s136
        %p138 = scmp.lt.s32.totalorder %s17, 1
        %s139 = scalar_select %p138, %s17, 1
        %s140 = smul.addr %s139, 8
        %s141 = smul.addr %s140, 8
        %s142 = scalar_lea.vmem %s0, %s141
        %v143 = vlaneseq
        %v144 = vshrl.u32 %v143, 7
        %v145 = vadd.s32 %v144, 8
        %v146 = vlaneseq
        %v147 = vand.u32 %v146, 127
        %v148 = vld [vmem:[%s142] sm:$0xff]
        %v149 = vld [vmem:[%s142 + $0x8] sm:$0xff]
        %v150 = vmul.f32 %v148, %v148
        %v151 = vmul.f32 %v149, %v149
        %s152 = scalar_lea.vmem %s142, 16
        %v153 = vld [vmem:[%s152] sm:$0xff]
        %v154 = vld [vmem:[%s152 + $0x8] sm:$0xff]
        %v155 = vmul.f32 %v153, %v153
        %v156 = vmul.f32 %v154, %v154
        %v157 = vadd.f32 %v150, %v155
        %v158 = vadd.f32 %v151, %v156
        %s159 = scalar_lea.vmem %s142, 32
        %v160 = vld [vmem:[%s159] sm:$0xff]
        %v161 = vld [vmem:[%s159 + $0x8] sm:$0xff]
        %v162 = vmul.f32 %v160, %v160
        %v163 = vmul.f32 %v161, %v161
        %v164 = vadd.f32 %v157, %v162
        %v165 = vadd.f32 %v158, %v163
        %s166 = scalar_lea.vmem %s142, 48
        %v167 = vld [vmem:[%s166] sm:$0xff]
        %v168 = vld [vmem:[%s166 + $0x8] sm:$0xff]
        %v169 = vmul.f32 %v167, %v167
        %v170 = vmul.f32 %v168, %v168
        %v171 = vadd.f32 %v164, %v169
        %v172 = vadd.f32 %v165, %v170
        %v173 = vrsqrt.pop %v171
        %v174 = vmul.f32 %v173, %v171
        %v175 = vmul.f32 %v174, %v173
        %v176 = vmul.f32 0.5, %v175
        %v177 = vsub.f32 1.5, %v176
        %v178 = vmul.f32 %v173, %v177
        %v179 = vmul.f32 %v171, %v178
        %vm180 = vcmp.eq.f32.partialorder %v171, inf
        %v181 = vsel %vm180, %v171, %v179
        %vm182 = vcmp.eq.f32.partialorder %v171, 0.0
        %v183 = vand.u32 %v171, 2147483648
        %v184 = vsel %vm182, %v183, %v181
        %v185 = vrsqrt.pop %v172
        %v186 = vmul.f32 %v185, %v172
        %v187 = vmul.f32 %v186, %v185
        %v188 = vmul.f32 0.5, %v187
        %v189 = vsub.f32 1.5, %v188
        %v190 = vmul.f32 %v185, %v189
        %v191 = vmul.f32 %v172, %v190
        %vm192 = vcmp.eq.f32.partialorder %v172, inf
        %v193 = vsel %vm192, %v172, %v191
        %vm194 = vcmp.eq.f32.partialorder %v172, 0.0
        %v195 = vand.u32 %v172, 2147483648
        %v196 = vsel %vm194, %v195, %v193
        %s197 = sld [smem:[#allocation2]]
        %v198 = vstv %s197
        %v199 = vmul.f32 %v184, %v198
        %v200 = vmul.f32 %v196, %v198
        %v201 = vrot.slane %v199, 7
        %v202 = vrot.slane %v200, 7
        %vm203 = vcmp.lt.s32.totalorder %v144, 1
        %v204 = vsel %vm203, %v201, %v202
        %v205 = vsel %vm203, %v202, %v201
        %v206 = vrot.slane %v199, 1
        %v207 = vrot.slane %v200, 1
        %vm208 = vcmp.lt.s32.totalorder %v144, 7
        %v209 = vsel %vm208, %v206, %v207
        %v210 = vsel %vm208, %v207, %v206
        %vm211 = vcmp.eq.s32.totalorder %v144, 0
        %vm212 = vcmp.eq.s32.totalorder %v145, 0
        %v213 = vsel %vm211, %v209, %v205
        %v214 = vsel %vm212, %v210, %v204
        %vm215 = vcmp.eq.s32.totalorder %v144, 15
        %vm216 = vcmp.eq.s32.totalorder %v145, 15
        %v217 = vsel %vm215, %v205, %v209
        %v218 = vsel %vm216, %v204, %v210
        %v219 = vmul.f32 %v213, 3.7266254e-06
        %v220 = vmul.f32 %v214, 3.7266254e-06
        %v221 = vmul.f32 %v199, 0.99999255
        %v222 = vmul.f32 %v200, 0.99999255
        %v223 = vadd.f32 %v219, %v221
        %v224 = vadd.f32 %v220, %v222
        %v225 = vmul.f32 %v217, 3.7266254e-06
        %v226 = vmul.f32 %v218, 3.7266254e-06
        %v227 = vadd.f32 %v223, %v225
        %v228 = vadd.f32 %v224, %v226
        %vm229 = vcmask 1047680
        %230 = vrot.lane.b32.xlu0 %v227, 16
        %v231 = vpop.permute.xlu0 %230
        %v232 = vsel %vm229, %v231, %v227
        %233 = vrot.lane.b32.xlu0 %v228, 16
        %v234 = vpop.permute.xlu0 %233
        %v235 = vsel %vm229, %v234, %v228
        %236 = vrot.lane.b32.xlu0 %v232, 16
        %v237 = vpop.permute.xlu0 %236
        %238 = vrot.lane.b32.xlu0 %v235, 16
        %v239 = vpop.permute.xlu0 %238
        %v240 = vsel %vm229, %v237, %v227
        %v241 = vsel %vm229, %v239, %v228
        %vm242 = vcmp.eq.s32.totalorder %v147, 0
        %245 = vrot.lane.b32.xlu0 %v240, 127
        %v246 = vpop.permute.xlu0 %245
        %247 = vrot.lane.b32.xlu0 %v241, 127
        %v248 = vpop.permute.xlu0 %247
        %251 = vrot.lane.b32.xlu0 %v240, 113
        %v252 = vpop.permute.xlu0 %251
        %253 = vrot.lane.b32.xlu0 %v241, 113
        %v254 = vpop.permute.xlu0 %253
        %v257 = vsel %vm242, %v246, %v252
        %v258 = vsel %vm242, %v248, %v254
        %vm259 = vcmp.eq.s32.totalorder %v147, 15
        %v260 = vsel %vm259, %v252, %v246
        %v261 = vsel %vm259, %v254, %v248
        %v262 = vmul.f32 %v257, 3.7266254e-06
        %v263 = vmul.f32 %v258, 3.7266254e-06
        %v264 = vmul.f32 %v227, 0.99999255
        %v265 = vmul.f32 %v228, 0.99999255
        %v266 = vadd.f32 %v262, %v264
        %v267 = vadd.f32 %v263, %v265
        %v268 = vmul.f32 %v260, 3.7266254e-06
        %v269 = vmul.f32 %v261, 3.7266254e-06
        %v270 = vadd.f32 %v266, %v268
        %v271 = vadd.f32 %v267, %v269
        %v272 = vrot.slane %v270, 6
        %v273 = vrot.slane %v271, 6
        %vm274 = vcmp.lt.s32.totalorder %v144, 2
        %v275 = vsel %vm274, %v272, %v273
        %v276 = vsel %vm274, %v273, %v272
        %v277 = vrot.slane %v270, 7
        %v278 = vrot.slane %v271, 7
        %v279 = vsel %vm203, %v277, %v278
        %v280 = vsel %vm203, %v278, %v277
        %v281 = vrot.slane %v270, 1
        %v282 = vrot.slane %v271, 1
        %v283 = vsel %vm208, %v281, %v282
        %v284 = vsel %vm208, %v282, %v281
        %v285 = vrot.slane %v270, 2
        %v286 = vrot.slane %v271, 2
        %vm287 = vcmp.lt.s32.totalorder %v144, 6
        %v288 = vsel %vm287, %v285, %v286
        %v289 = vsel %vm287, %v286, %v285
        %v290 = vsel %vm211, %v288, %v276
        %v291 = vsel %vm212, %v289, %v275
        %vm292 = vcmp.eq.s32.totalorder %v144, 1
        %vm293 = vcmp.eq.s32.totalorder %v145, 1
        %v294 = vsel %vm292, %v270, %v290
        %v295 = vsel %vm293, %v271, %v291
        %v296 = vsel %vm211, %v283, %v280
        %v297 = vsel %vm212, %v284, %v279
        %v298 = vsel %vm215, %v280, %v283
        %v299 = vsel %vm216, %v279, %v284
        %v300 = vsel %vm215, %v276, %v288
        %v301 = vsel %vm216, %v275, %v289
        %vm302 = vcmp.eq.s32.totalorder %v144, 14
        %vm303 = vcmp.eq.s32.totalorder %v145, 14
        %v304 = vsel %vm302, %v270, %v300
        %v305 = vsel %vm303, %v271, %v301
        %306 = vrot.lane.b32.xlu0 %v294, 16
        %v307 = vpop.permute.xlu0 %306
        %v308 = vsel %vm229, %v307, %v294
        %309 = vrot.lane.b32.xlu0 %v295, 16
        %v310 = vpop.permute.xlu0 %309
        %v311 = vsel %vm229, %v310, %v295
        %312 = vrot.lane.b32.xlu0 %v308, 16
        %v313 = vpop.permute.xlu0 %312
        %314 = vrot.lane.b32.xlu0 %v311, 16
        %v315 = vpop.permute.xlu0 %314
        %v316 = vsel %vm229, %v313, %v294
        %v317 = vsel %vm229, %v315, %v295
        %320 = vrot.lane.b32.xlu0 %v316, 126
        %v321 = vpop.permute.xlu0 %320
        %322 = vrot.lane.b32.xlu0 %v317, 126
        %v323 = vpop.permute.xlu0 %322
        %326 = vrot.lane.b32.xlu0 %v316, 114
        %v327 = vpop.permute.xlu0 %326
        %328 = vrot.lane.b32.xlu0 %v317, 114
        %v329 = vpop.permute.xlu0 %328
        %v332 = vsel %vm242, %v321, %v327
        %v333 = vsel %vm242, %v323, %v329
        %vm334 = vcmp.eq.s32.totalorder %v147, 1
        %v335 = vsel %vm334, %v294, %v332
        %v336 = vsel %vm334, %v295, %v333
        %337 = vrot.lane.b32.xlu0 %v316, 127
        %v338 = vpop.permute.xlu0 %337
        %339 = vrot.lane.b32.xlu0 %v317, 127
        %v340 = vpop.permute.xlu0 %339
        %343 = vrot.lane.b32.xlu0 %v316, 113
        %v344 = vpop.permute.xlu0 %343
        %345 = vrot.lane.b32.xlu0 %v317, 113
        %v346 = vpop.permute.xlu0 %345
        %v349 = vsel %vm242, %v338, %v344
        %v350 = vsel %vm242, %v340, %v346
        %v351 = vsel %vm259, %v344, %v338
        %v352 = vsel %vm259, %v346, %v340
        %v353 = vsel %vm259, %v327, %v321
        %v354 = vsel %vm259, %v329, %v323
        %vm355 = vcmp.eq.s32.totalorder %v147, 14
        %v356 = vsel %vm355, %v294, %v353
        %v357 = vsel %vm355, %v295, %v354
        %v358 = vmul.f32 %v335, -0.041666668
        %v359 = vmul.f32 %v336, -0.041666668
        %v360 = vmul.f32 %v349, -0.033333335
        %v361 = vmul.f32 %v350, -0.033333335
        %v362 = vadd.f32 %v358, %v360
        %v363 = vadd.f32 %v359, %v361
        %v364 = vmul.f32 %v349, -0.06666667
        %v365 = vmul.f32 %v350, -0.06666667
        %v366 = vadd.f32 %v358, %v364
        %v367 = vadd.f32 %v359, %v365
        %v368 = vmul.f32 %v294, -0.33333334
        %v369 = vmul.f32 %v295, -0.33333334
        %v370 = vadd.f32 %v366, %v368
        %v371 = vadd.f32 %v367, %v369
        %v372 = vmul.f32 %v351, 0.033333335
        %v373 = vmul.f32 %v352, 0.033333335
        %v374 = vadd.f32 %v362, %v372
        %v375 = vadd.f32 %v363, %v373
        %v376 = vmul.f32 %v351, -0.06666667
        %v377 = vmul.f32 %v352, -0.06666667
        %v378 = vadd.f32 %v370, %v376
        %v379 = vadd.f32 %v371, %v377
        %v380 = vmul.f32 %v356, 0.041666668
        %v381 = vmul.f32 %v357, 0.041666668
        %v382 = vadd.f32 %v374, %v380
        %v383 = vadd.f32 %v375, %v381
        %v384 = vmul.f32 %v356, -0.041666668
        %v385 = vmul.f32 %v357, -0.041666668
        %v386 = vadd.f32 %v378, %v384
        %v387 = vadd.f32 %v379, %v385
        %388 = vrot.lane.b32.xlu0 %v296, 16
        %v389 = vpop.permute.xlu0 %388
        %v390 = vsel %vm229, %v389, %v296
        %391 = vrot.lane.b32.xlu0 %v297, 16
        %v392 = vpop.permute.xlu0 %391
        %v393 = vsel %vm229, %v392, %v297
        %394 = vrot.lane.b32.xlu0 %v390, 16
        %v395 = vpop.permute.xlu0 %394
        %396 = vrot.lane.b32.xlu0 %v393, 16
        %v397 = vpop.permute.xlu0 %396
        %v398 = vsel %vm229, %v395, %v296
        %v399 = vsel %vm229, %v397, %v297
        %402 = vrot.lane.b32.xlu0 %v398, 126
        %v403 = vpop.permute.xlu0 %402
        %404 = vrot.lane.b32.xlu0 %v399, 126
        %v405 = vpop.permute.xlu0 %404
        %408 = vrot.lane.b32.xlu0 %v398, 114
        %v409 = vpop.permute.xlu0 %408
        %410 = vrot.lane.b32.xlu0 %v399, 114
        %v411 = vpop.permute.xlu0 %410
        %v414 = vsel %vm242, %v403, %v409
        %v415 = vsel %vm242, %v405, %v411
        %v416 = vsel %vm334, %v296, %v414
        %v417 = vsel %vm334, %v297, %v415
        %418 = vrot.lane.b32.xlu0 %v398, 127
        %v419 = vpop.permute.xlu0 %418
        %420 = vrot.lane.b32.xlu0 %v399, 127
        %v421 = vpop.permute.xlu0 %420
        %424 = vrot.lane.b32.xlu0 %v398, 113
        %v425 = vpop.permute.xlu0 %424
        %426 = vrot.lane.b32.xlu0 %v399, 113
        %v427 = vpop.permute.xlu0 %426
        %v430 = vsel %vm242, %v419, %v425
        %v431 = vsel %vm242, %v421, %v427
        %v432 = vsel %vm259, %v425, %v419
        %v433 = vsel %vm259, %v427, %v421
        %v434 = vsel %vm259, %v409, %v403
        %v435 = vsel %vm259, %v411, %v405
        %v436 = vsel %vm355, %v296, %v434
        %v437 = vsel %vm355, %v297, %v435
        %v438 = vmul.f32 %v416, -0.06666667
        %v439 = vmul.f32 %v417, -0.06666667
        %v440 = vadd.f32 %v382, %v438
        %v441 = vadd.f32 %v383, %v439
        %v442 = vmul.f32 %v416, -0.033333335
        %v443 = vmul.f32 %v417, -0.033333335
        %v444 = vadd.f32 %v386, %v442
        %v445 = vadd.f32 %v387, %v443
        %v446 = vmul.f32 %v430, -0.083333336
        %v447 = vmul.f32 %v431, -0.083333336
        %v448 = vadd.f32 %v440, %v446
        %v449 = vadd.f32 %v441, %v447
        %v450 = vadd.f32 %v444, %v446
        %v451 = vadd.f32 %v445, %v447
        %v452 = vmul.f32 %v296, -0.16666667
        %v453 = vmul.f32 %v297, -0.16666667
        %v454 = vadd.f32 %v450, %v452
        %v455 = vadd.f32 %v451, %v453
        %v456 = vmul.f32 %v432, 0.083333336
        %v457 = vmul.f32 %v433, 0.083333336
        %v458 = vadd.f32 %v448, %v456
        %v459 = vadd.f32 %v449, %v457
        %v460 = vmul.f32 %v432, -0.083333336
        %v461 = vmul.f32 %v433, -0.083333336
        %v462 = vadd.f32 %v454, %v460
        %v463 = vadd.f32 %v455, %v461
        %v464 = vmul.f32 %v436, 0.06666667
        %v465 = vmul.f32 %v437, 0.06666667
        %v466 = vadd.f32 %v458, %v464
        %v467 = vadd.f32 %v459, %v465
        %v468 = vmul.f32 %v436, -0.033333335
        %v469 = vmul.f32 %v437, -0.033333335
        %v470 = vadd.f32 %v462, %v468
        %v471 = vadd.f32 %v463, %v469
        %472 = vrot.lane.b32.xlu0 %v270, 16
        %v473 = vpop.permute.xlu0 %472
        %v474 = vsel %vm229, %v473, %v270
        %475 = vrot.lane.b32.xlu0 %v271, 16
        %v476 = vpop.permute.xlu0 %475
        %v477 = vsel %vm229, %v476, %v271
        %478 = vrot.lane.b32.xlu0 %v474, 16
        %v479 = vpop.permute.xlu0 %478
        %480 = vrot.lane.b32.xlu0 %v477, 16
        %v481 = vpop.permute.xlu0 %480
        %v482 = vsel %vm229, %v479, %v270
        %v483 = vsel %vm229, %v481, %v271
        %486 = vrot.lane.b32.xlu0 %v482, 126
        %v487 = vpop.permute.xlu0 %486
        %488 = vrot.lane.b32.xlu0 %v483, 126
        %v489 = vpop.permute.xlu0 %488
        %492 = vrot.lane.b32.xlu0 %v482, 114
        %v493 = vpop.permute.xlu0 %492
        %494 = vrot.lane.b32.xlu0 %v483, 114
        %v495 = vpop.permute.xlu0 %494
        %v498 = vsel %vm242, %v487, %v493
        %v499 = vsel %vm242, %v489, %v495
        %v500 = vsel %vm334, %v270, %v498
        %v501 = vsel %vm334, %v271, %v499
        %502 = vrot.lane.b32.xlu0 %v482, 127
        %v503 = vpop.permute.xlu0 %502
        %504 = vrot.lane.b32.xlu0 %v483, 127
        %v505 = vpop.permute.xlu0 %504
        %508 = vrot.lane.b32.xlu0 %v482, 113
        %v509 = vpop.permute.xlu0 %508
        %510 = vrot.lane.b32.xlu0 %v483, 113
        %v511 = vpop.permute.xlu0 %510
        %v514 = vsel %vm242, %v503, %v509
        %v515 = vsel %vm242, %v505, %v511
        %v516 = vsel %vm259, %v509, %v503
        %v517 = vsel %vm259, %v511, %v505
        %v518 = vsel %vm259, %v493, %v487
        %v519 = vsel %vm259, %v495, %v489
        %v520 = vsel %vm355, %v270, %v518
        %v521 = vsel %vm355, %v271, %v519
        %v522 = vmul.f32 %v500, -0.33333334
        %v523 = vmul.f32 %v501, -0.33333334
        %v524 = vadd.f32 %v466, %v522
        %v525 = vadd.f32 %v467, %v523
        %v526 = vmul.f32 %v514, -0.16666667
        %v527 = vmul.f32 %v515, -0.16666667
        %v528 = vadd.f32 %v524, %v526
        %v529 = vadd.f32 %v525, %v527
        %v530 = vmul.f32 %v516, 0.16666667
        %v531 = vmul.f32 %v517, 0.16666667
        %v532 = vadd.f32 %v528, %v530
        %v533 = vadd.f32 %v529, %v531
        %v534 = vmul.f32 %v520, 0.33333334
        %v535 = vmul.f32 %v521, 0.33333334
        %v536 = vadd.f32 %v532, %v534
        %v537 = vadd.f32 %v533, %v535
        %538 = vrot.lane.b32.xlu0 %v298, 16
        %v539 = vpop.permute.xlu0 %538
        %v540 = vsel %vm229, %v539, %v298
        %541 = vrot.lane.b32.xlu0 %v299, 16
        %v542 = vpop.permute.xlu0 %541
        %v543 = vsel %vm229, %v542, %v299
        %544 = vrot.lane.b32.xlu0 %v540, 16
        %v545 = vpop.permute.xlu0 %544
        %546 = vrot.lane.b32.xlu0 %v543, 16
        %v547 = vpop.permute.xlu0 %546
        %v548 = vsel %vm229, %v545, %v298
        %v549 = vsel %vm229, %v547, %v299
        %552 = vrot.lane.b32.xlu0 %v548, 126
        %v553 = vpop.permute.xlu0 %552
        %554 = vrot.lane.b32.xlu0 %v549, 126
        %v555 = vpop.permute.xlu0 %554
        %558 = vrot.lane.b32.xlu0 %v548, 114
        %v559 = vpop.permute.xlu0 %558
        %560 = vrot.lane.b32.xlu0 %v549, 114
        %v561 = vpop.permute.xlu0 %560
        %v564 = vsel %vm242, %v553, %v559
        %v565 = vsel %vm242, %v555, %v561
        %v566 = vsel %vm334, %v298, %v564
        %v567 = vsel %vm334, %v299, %v565
        %568 = vrot.lane.b32.xlu0 %v548, 127
        %v569 = vpop.permute.xlu0 %568
        %570 = vrot.lane.b32.xlu0 %v549, 127
        %v571 = vpop.permute.xlu0 %570
        %574 = vrot.lane.b32.xlu0 %v548, 113
        %v575 = vpop.permute.xlu0 %574
        %576 = vrot.lane.b32.xlu0 %v549, 113
        %v577 = vpop.permute.xlu0 %576
        %v580 = vsel %vm242, %v569, %v575
        %v581 = vsel %vm242, %v571, %v577
        %v582 = vsel %vm259, %v575, %v569
        %v583 = vsel %vm259, %v577, %v571
        %v584 = vsel %vm259, %v559, %v553
        %v585 = vsel %vm259, %v561, %v555
        %v586 = vsel %vm355, %v298, %v584
        %v587 = vsel %vm355, %v299, %v585
        %v588 = vmul.f32 %v566, -0.06666667
        %v589 = vmul.f32 %v567, -0.06666667
        %v590 = vadd.f32 %v536, %v588
        %v591 = vadd.f32 %v537, %v589
        %v592 = vmul.f32 %v566, 0.033333335
        %v593 = vmul.f32 %v567, 0.033333335
        %v594 = vadd.f32 %v470, %v592
        %v595 = vadd.f32 %v471, %v593
        %v596 = vmul.f32 %v580, -0.083333336
        %v597 = vmul.f32 %v581, -0.083333336
        %v598 = vadd.f32 %v590, %v596
        %v599 = vadd.f32 %v591, %v597
        %v600 = vmul.f32 %v580, 0.083333336
        %v601 = vmul.f32 %v581, 0.083333336
        %v602 = vadd.f32 %v594, %v600
        %v603 = vadd.f32 %v595, %v601
        %v604 = vmul.f32 %v298, 0.16666667
        %v605 = vmul.f32 %v299, 0.16666667
        %v606 = vadd.f32 %v602, %v604
        %v607 = vadd.f32 %v603, %v605
        %v608 = vmul.f32 %v582, 0.083333336
        %v609 = vmul.f32 %v583, 0.083333336
        %v610 = vadd.f32 %v598, %v608
        %v611 = vadd.f32 %v599, %v609
        %v612 = vadd.f32 %v606, %v608
        %v613 = vadd.f32 %v607, %v609
        %v614 = vmul.f32 %v586, 0.06666667
        %v615 = vmul.f32 %v587, 0.06666667
        %v616 = vadd.f32 %v610, %v614
        %v617 = vadd.f32 %v611, %v615
        %v618 = vmul.f32 %v586, 0.033333335
        %v619 = vmul.f32 %v587, 0.033333335
        %v620 = vadd.f32 %v612, %v618
        %v621 = vadd.f32 %v613, %v619
        %622 = vrot.lane.b32.xlu0 %v304, 16
        %v623 = vpop.permute.xlu0 %622
        %v624 = vsel %vm229, %v623, %v304
        %625 = vrot.lane.b32.xlu0 %v305, 16
        %v626 = vpop.permute.xlu0 %625
        %v627 = vsel %vm229, %v626, %v305
        %628 = vrot.lane.b32.xlu0 %v624, 16
        %v629 = vpop.permute.xlu0 %628
        %630 = vrot.lane.b32.xlu0 %v627, 16
        %v631 = vpop.permute.xlu0 %630
        %v632 = vsel %vm229, %v629, %v304
        %v633 = vsel %vm229, %v631, %v305
        %636 = vrot.lane.b32.xlu0 %v632, 126
        %v637 = vpop.permute.xlu0 %636
        %638 = vrot.lane.b32.xlu0 %v633, 126
        %v639 = vpop.permute.xlu0 %638
        %642 = vrot.lane.b32.xlu0 %v632, 114
        %v643 = vpop.permute.xlu0 %642
        %644 = vrot.lane.b32.xlu0 %v633, 114
        %v645 = vpop.permute.xlu0 %644
        %v648 = vsel %vm242, %v637, %v643
        %v649 = vsel %vm242, %v639, %v645
        %v650 = vsel %vm334, %v304, %v648
        %v651 = vsel %vm334, %v305, %v649
        %652 = vrot.lane.b32.xlu0 %v632, 127
        %v653 = vpop.permute.xlu0 %652
        %654 = vrot.lane.b32.xlu0 %v633, 127
        %v655 = vpop.permute.xlu0 %654
        %658 = vrot.lane.b32.xlu0 %v632, 113
        %v659 = vpop.permute.xlu0 %658
        %660 = vrot.lane.b32.xlu0 %v633, 113
        %v661 = vpop.permute.xlu0 %660
        %v664 = vsel %vm242, %v653, %v659
        %v665 = vsel %vm242, %v655, %v661
        %v666 = vsel %vm259, %v659, %v653
        %v667 = vsel %vm259, %v661, %v655
        %v668 = vsel %vm259, %v643, %v637
        %v669 = vsel %vm259, %v645, %v639
        %v670 = vsel %vm355, %v304, %v668
        %v671 = vsel %vm355, %v305, %v669
        %v672 = vmul.f32 %v650, -0.041666668
        %v673 = vmul.f32 %v651, -0.041666668
        %v674 = vadd.f32 %v616, %v672
        %v675 = vadd.f32 %v617, %v673
        %v676 = vmul.f32 %v650, 0.041666668
        %v677 = vmul.f32 %v651, 0.041666668
        %v678 = vadd.f32 %v620, %v676
        %v679 = vadd.f32 %v621, %v677
        %v680 = vmul.f32 %v664, -0.033333335
        %v681 = vmul.f32 %v665, -0.033333335
        %v682 = vadd.f32 %v674, %v680
        %v683 = vadd.f32 %v675, %v681
        %v684 = vmul.f32 %v664, 0.06666667
        %v685 = vmul.f32 %v665, 0.06666667
        %v686 = vadd.f32 %v678, %v684
        %v687 = vadd.f32 %v679, %v685
        %v688 = vmul.f32 %v304, 0.33333334
        %v689 = vmul.f32 %v305, 0.33333334
        %v690 = vadd.f32 %v686, %v688
        %v691 = vadd.f32 %v687, %v689
        %v692 = vmul.f32 %v666, 0.033333335
        %v693 = vmul.f32 %v667, 0.033333335
        %v694 = vadd.f32 %v682, %v692
        %v695 = vadd.f32 %v683, %v693
        %v696 = vmul.f32 %v666, 0.06666667
        %v697 = vmul.f32 %v667, 0.06666667
        %v698 = vadd.f32 %v690, %v696
        %v699 = vadd.f32 %v691, %v697
        %v700 = vmul.f32 %v670, 0.041666668
        %v701 = vmul.f32 %v671, 0.041666668
        %v702 = vadd.f32 %v694, %v700
        %v703 = vadd.f32 %v695, %v701
        %v704 = vadd.f32 %v698, %v700
        %v705 = vadd.f32 %v699, %v701
        %v706 = vmul.f32 %v702, %v702
        %v707 = vmul.f32 %v703, %v703
        %v708 = vmul.f32 %v704, %v704
        %v709 = vmul.f32 %v705, %v705
        %v710 = vadd.f32 %v706, %v708
        %v711 = vadd.f32 %v707, %v709
        %v712 = vrsqrt.pop %v710
        %v713 = vmul.f32 %v712, %v710
        %v714 = vmul.f32 %v713, %v712
        %v715 = vmul.f32 0.5, %v714
        %v716 = vsub.f32 1.5, %v715
        %v717 = vmul.f32 %v712, %v716
        %v718 = vmul.f32 %v710, %v717
        %vm719 = vcmp.eq.f32.partialorder %v710, inf
        %v720 = vsel %vm719, %v710, %v718
        %vm721 = vcmp.eq.f32.partialorder %v710, 0.0
        %v722 = vand.u32 %v710, 2147483648
        %v723 = vsel %vm721, %v722, %v720
        %v724 = vrsqrt.pop %v711
        %v725 = vmul.f32 %v724, %v711
        %v726 = vmul.f32 %v725, %v724
        %v727 = vmul.f32 0.5, %v726
        %v728 = vsub.f32 1.5, %v727
        %v729 = vmul.f32 %v724, %v728
        %v730 = vmul.f32 %v711, %v729
        %vm731 = vcmp.eq.f32.partialorder %v711, inf
        %v732 = vsel %vm731, %v711, %v730
        %vm733 = vcmp.eq.f32.partialorder %v711, 0.0
        %v734 = vand.u32 %v711, 2147483648
        %v735 = vsel %vm733, %v734, %v732
        %v736 = vadd.f32 %v704, 1e-05
        %v737 = vadd.f32 %v705, 1e-05
        %v738 = vand.u32 2147483647, %v736
        %v739 = vand.u32 2147483647, %v737
        %v740 = vand.u32 2147483647, %v702
        %v741 = vand.u32 2147483647, %v703
        %v742 = vmul.f32 %v738, 0.41421357
        %v743 = vmul.f32 %v739, 0.41421357
        %vm744 = vcmp.le.f32.partialorder %v740, %v742
        %vm745 = vcmp.le.f32.partialorder %v741, %v743
        %v746 = vmul.f32 %v740, 0.41421357
        %v747 = vmul.f32 %v741, 0.41421357
        %vm748 = vcmp.lt.f32.partialorder %v738, %v746
        %vm749 = vcmp.lt.f32.partialorder %v739, %v747
        %v750 = vsel %vm748, 2, 1
        %v751 = vsel %vm749, 2, 1
        %v752 = vsel %vm744, 0, %v750
        %v753 = vsel %vm745, 0, %v751
        %vm754 = vcmp.ge.f32.partialorder %v702, 0.0
        %vm755 = vcmp.ge.f32.partialorder %v703, 0.0
        %v756 = vsub.s32 0, %v752
        %v757 = vsub.s32 0, %v753
        %v758 = vsel %vm754, %v752, %v756
        %v759 = vsel %vm755, %v753, %v757
        %v760 = vsub.s32 4, %v752
        %v761 = vsub.s32 4, %v753
        %v762 = vsub.s32 %v752, 4
        %v763 = vsub.s32 %v753, 4
        %v764 = vsel %vm754, %v760, %v762
        %v765 = vsel %vm755, %v761, %v763
        %vm766 = vcmp.ge.f32.partialorder %v736, 0.0
        %vm767 = vcmp.ge.f32.partialorder %v737, 0.0
        %v768 = vsel %vm766, %v758, %v764
        %v769 = vsel %vm767, %v759, %v765
        %v770 = vadd.s32 %v768, 4
        %v771 = vadd.s32 %v769, 4
        %v772 = vand.u32 %v770, 3
        %v773 = vand.u32 %v771, 3
        %v774 = vrot.slane %v723, 7
        %v775 = vrot.slane %v735, 7
        %v776 = vsel %vm203, %v774, %v775
        %v777 = vsel %vm203, %v775, %v774
        %v778 = vsel %vm211, 0.0, %v777
        %v779 = vsel %vm212, 0.0, %v776
        %v780 = vrot.slane %v723, 1
        %v781 = vrot.slane %v735, 1
        %v782 = vsel %vm208, %v780, %v781
        %v783 = vsel %vm208, %v781, %v780
        %v784 = vsel %vm215, 0.0, %v782
        %v785 = vsel %vm216, 0.0, %v783
        %vm786 = vcmp.eq.s32.totalorder %v772, 0
        %vm787 = vcmp.eq.s32.totalorder %v773, 0
        %vm788 = vcmp.lt.f32.partialorder %v723, %v778
        %vm789 = vcmp.lt.f32.partialorder %v735, %v779
        %vm790 = vcmp.lt.f32.partialorder %v723, %v784
        %vm791 = vcmp.lt.f32.partialorder %v735, %v785
        %vm792 = vmor %vm788, %vm790
        %vm793 = vmor %vm789, %vm791
        %vm794 = vmand %vm786, %vm792
        %vm795 = vmand %vm787, %vm793
        %vm796 = vcmp.eq.s32.totalorder %v772, 1
        %vm797 = vcmp.eq.s32.totalorder %v773, 1
        %798 = vrot.lane.b32.xlu0 %v778, 16
        %v799 = vpop.permute.xlu0 %798
        %v800 = vsel %vm229, %v799, %v778
        %801 = vrot.lane.b32.xlu0 %v779, 16
        %v802 = vpop.permute.xlu0 %801
        %v803 = vsel %vm229, %v802, %v779
        %804 = vrot.lane.b32.xlu0 %v800, 16
        %v805 = vpop.permute.xlu0 %804
        %806 = vrot.lane.b32.xlu0 %v803, 16
        %v807 = vpop.permute.xlu0 %806
        %v808 = vsel %vm229, %v805, %v778
        %v809 = vsel %vm229, %v807, %v779
        %812 = vrot.lane.b32.xlu0 %v808, 113
        %v813 = vpop.permute.xlu0 %812
        %814 = vrot.lane.b32.xlu0 %v809, 113
        %v815 = vpop.permute.xlu0 %814
        %v818 = vsel %vm242, 0.0, %v813
        %v819 = vsel %vm242, 0.0, %v815
        %vm820 = vcmp.lt.f32.partialorder %v723, %v818
        %vm821 = vcmp.lt.f32.partialorder %v735, %v819
        %822 = vrot.lane.b32.xlu0 %v784, 16
        %v823 = vpop.permute.xlu0 %822
        %v824 = vsel %vm229, %v823, %v784
        %825 = vrot.lane.b32.xlu0 %v785, 16
        %v826 = vpop.permute.xlu0 %825
        %v827 = vsel %vm229, %v826, %v785
        %828 = vrot.lane.b32.xlu0 %v824, 16
        %v829 = vpop.permute.xlu0 %828
        %830 = vrot.lane.b32.xlu0 %v827, 16
        %v831 = vpop.permute.xlu0 %830
        %v832 = vsel %vm229, %v829, %v784
        %v833 = vsel %vm229, %v831, %v785
        %836 = vrot.lane.b32.xlu0 %v832, 127
        %v837 = vpop.permute.xlu0 %836
        %838 = vrot.lane.b32.xlu0 %v833, 127
        %v839 = vpop.permute.xlu0 %838
        %v842 = vsel %vm259, 0.0, %v837
        %v843 = vsel %vm259, 0.0, %v839
        %vm844 = vcmp.lt.f32.partialorder %v723, %v842
        %vm845 = vcmp.lt.f32.partialorder %v735, %v843
        %vm846 = vmor %vm820, %vm844
        %vm847 = vmor %vm821, %vm845
        %vm848 = vmand %vm796, %vm846
        %vm849 = vmand %vm797, %vm847
        %vm850 = vmor %vm794, %vm848
        %vm851 = vmor %vm795, %vm849
        %vm852 = vcmp.eq.s32.totalorder %v772, 2
        %vm853 = vcmp.eq.s32.totalorder %v773, 2
        %854 = vrot.lane.b32.xlu0 %v723, 16
        %v855 = vpop.permute.xlu0 %854
        %v856 = vsel %vm229, %v855, %v723
        %857 = vrot.lane.b32.xlu0 %v735, 16
        %v858 = vpop.permute.xlu0 %857
        %v859 = vsel %vm229, %v858, %v735
        %860 = vrot.lane.b32.xlu0 %v856, 16
        %v861 = vpop.permute.xlu0 %860
        %862 = vrot.lane.b32.xlu0 %v859, 16
        %v863 = vpop.permute.xlu0 %862
        %v864 = vsel %vm229, %v861, %v723
        %v865 = vsel %vm229, %v863, %v735
        %868 = vrot.lane.b32.xlu0 %v864, 113
        %v869 = vpop.permute.xlu0 %868
        %870 = vrot.lane.b32.xlu0 %v865, 113
        %v871 = vpop.permute.xlu0 %870
        %v874 = vsel %vm242, 0.0, %v869
        %v875 = vsel %vm242, 0.0, %v871
        %vm876 = vcmp.lt.f32.partialorder %v723, %v874
        %vm877 = vcmp.lt.f32.partialorder %v735, %v875
        %878 = vrot.lane.b32.xlu0 %v864, 127
        %v879 = vpop.permute.xlu0 %878
        %880 = vrot.lane.b32.xlu0 %v865, 127
        %v881 = vpop.permute.xlu0 %880
        %v884 = vsel %vm259, 0.0, %v879
        %v885 = vsel %vm259, 0.0, %v881
        %vm886 = vcmp.lt.f32.partialorder %v723, %v884
        %vm887 = vcmp.lt.f32.partialorder %v735, %v885
        %vm888 = vmor %vm876, %vm886
        %vm889 = vmor %vm877, %vm887
        %vm890 = vmand %vm852, %vm888
        %vm891 = vmand %vm853, %vm889
        %vm892 = vmor %vm850, %vm890
        %vm893 = vmor %vm851, %vm891
        %vm894 = vcmp.eq.s32.totalorder %v772, 3
        %vm895 = vcmp.eq.s32.totalorder %v773, 3
        %896 = vrot.lane.b32.xlu0 %v808, 127
        %v897 = vpop.permute.xlu0 %896
        %898 = vrot.lane.b32.xlu0 %v809, 127
        %v899 = vpop.permute.xlu0 %898
        %v902 = vsel %vm259, 0.0, %v897
        %v903 = vsel %vm259, 0.0, %v899
        %vm904 = vcmp.lt.f32.partialorder %v723, %v902
        %vm905 = vcmp.lt.f32.partialorder %v735, %v903
        %906 = vrot.lane.b32.xlu0 %v832, 113
        %v907 = vpop.permute.xlu0 %906
        %908 = vrot.lane.b32.xlu0 %v833, 113
        %v909 = vpop.permute.xlu0 %908
        %v912 = vsel %vm242, 0.0, %v907
        %v913 = vsel %vm242, 0.0, %v909
        %vm914 = vcmp.lt.f32.partialorder %v723, %v912
        %vm915 = vcmp.lt.f32.partialorder %v735, %v913
        %vm916 = vmor %vm904, %vm914
        %vm917 = vmor %vm905, %vm915
        %vm918 = vmand %vm894, %vm916
        %vm919 = vmand %vm895, %vm917
        %vm920 = vmor %vm892, %vm918
        %vm921 = vmor %vm893, %vm919
        %v922 = vsel %vm920, 0.0, %v723
        %v923 = vsel %vm921, 0.0, %v735
        %vm924 = vcmp.lt.f32.partialorder %v922, 0.05
        %vm925 = vcmp.lt.f32.partialorder %v923, 0.05
        %v926 = vsel %vm924, 0.0, %v922
        %v927 = vsel %vm925, 0.0, %v923
        %vm928 = vcmp.lt.f32.partialorder %v926, 0.2
        %vm929 = vcmp.lt.f32.partialorder %v927, 0.2
        %vm930 = vcmp.gt.f32.partialorder %v926, 0.05
        %vm931 = vcmp.gt.f32.partialorder %v927, 0.05
        %vm932 = vmand %vm928, %vm930
        %vm933 = vmand %vm929, %vm931
        %vm934 = vcmp.gt.f32.partialorder %v926, 0.2
        %vm935 = vcmp.gt.f32.partialorder %v927, 0.2
        %v936 = vsel %vm934, 1, 0
        %v937 = vsel %vm935, 1, 0
        %v938 = vcvt.s32.f32 %v936
        %v939 = vcvt.s32.f32 %v937
        %940 = vrot.lane.b32.xlu0 %v938, 16
        %v941 = vpop.permute.xlu0 %940
        %v942 = vsel %vm229, %v941, %v938
        %943 = vrot.lane.b32.xlu0 %v939, 16
        %v944 = vpop.permute.xlu0 %943
        %v945 = vsel %vm229, %v944, %v939
        %946 = vrot.lane.b32.xlu0 %v942, 16
        %v947 = vpop.permute.xlu0 %946
        %948 = vrot.lane.b32.xlu0 %v945, 16
        %v949 = vpop.permute.xlu0 %948
        %v950 = vsel %vm229, %v947, %v938
        %v951 = vsel %vm229, %v949, %v939
        %954 = vrot.lane.b32.xlu0 %v950, 127
        %v955 = vpop.permute.xlu0 %954
        %956 = vrot.lane.b32.xlu0 %v951, 127
        %v957 = vpop.permute.xlu0 %956
        %960 = vrot.lane.b32.xlu0 %v950, 113
        %v961 = vpop.permute.xlu0 %960
        %962 = vrot.lane.b32.xlu0 %v951, 113
        %v963 = vpop.permute.xlu0 %962
        %v966 = vsel %vm242, %v955, %v961
        %v967 = vsel %vm242, %v957, %v963
        %v968 = vsel %vm259, %v961, %v955
        %v969 = vsel %vm259, %v963, %v957
        %v970 = vadd.f32 %v966, %v938
        %v971 = vadd.f32 %v967, %v939
        %v972 = vadd.f32 %v970, %v968
        %v973 = vadd.f32 %v971, %v969
        %v974 = vrot.slane %v972, 7
        %v975 = vrot.slane %v973, 7
        %v976 = vsel %vm203, %v974, %v975
        %v977 = vsel %vm203, %v975, %v974
        %v978 = vrot.slane %v972, 1
        %v979 = vrot.slane %v973, 1
        %v980 = vsel %vm208, %v978, %v979
        %v981 = vsel %vm208, %v979, %v978
        %v982 = vsel %vm211, %v980, %v977
        %v983 = vsel %vm212, %v981, %v976
        %v984 = vsel %vm215, %v977, %v980
        %v985 = vsel %vm216, %v976, %v981
        %v986 = vadd.f32 %v982, %v972
        %v987 = vadd.f32 %v983, %v973
        %v988 = vadd.f32 %v986, %v984
        %v989 = vadd.f32 %v987, %v985
        %vm990 = vcmp.gt.f32.partialorder %v988, 0.0
        %vm991 = vcmp.gt.f32.partialorder %v989, 0.0
        %vm992 = vmand %vm932, %vm990
        %vm993 = vmand %vm933, %vm991
        %vm994 = vmxor %vm992, 1
        %vm995 = vmxor %vm993, 1
        %vm996 = vmxor %vm934, 1
        %vm997 = vmxor %vm935, 1
        %vm998 = vmand %vm994, %vm996
        %vm999 = vmand %vm995, %vm997
        %v1000 = vsel %vm998, 0.0, %v926
        %v1001 = vsel %vm999, 0.0, %v927
        %vm1002 = vcmask 130048
        %1003 = vst.msk [vmem:[%s137] sm:$0xff] %vm1002, %v1000
        %1004 = vst.msk [vmem:[%s137 + $0x8] sm:$0xff] %vm1002, %v1001
        %s1005 = sand.u32 %s72, 1
        %s1006 = scalar_lea.sflag [#allocation4], %s1005
        %s1007 = sand.u32 %s72, 1
        %s1008 = smul.addr %s1007, 16
        %s1009 = scalar_lea.vmem [#allocation3], %s1008
        // Predicated region
        $region29: #{canny_pallas.1} parent=27 // pred_check
          %p1010 = pneg %p82
        $region30: #{canny_pallas.1} parent=27 // pred_check_branch
          %1012 = sbr.rel (%p1010) target = $region32
        $region31: #{canny_pallas.1} parent=27 // pred_region
          %1014 = vsyncadd %s1006, 0
          %s1015 = smul.addr %s17, 2
          %s1016 = smul.addr %s1015, 8
          %s1017 = scalar_lea.hbm %s2, %s1016
          %s1018 = sshll.u32 %s1009, 4
          %s1019 = int_to_ptr.vmem [resolvable:$true] %s1018
          %s1020 = sshll.u32 %s1017, 4
          %s1021 = int_to_ptr.hbm [resolvable:$true] %s1020
          %1026 = dma.vmem_to_hbm [thread:$0]  %s1019, 256, %s1021, %s1006, 128, 128, 8
        $region32: #{canny_pallas.1} parent=27 // pred_fallthru
          _
      $region28: #{canny_pallas.1} parent=5 // pred_fallthru
        _
      %p1027 = scmp.le.s32.totalorder 2, %s12
      // Predicated region
      $region33: #{canny_pallas.1} parent=5 // pred_check
        %p1028 = pneg %p1027
      $region34: #{canny_pallas.1} parent=5 // pred_check_branch
        %1030 = sbr.rel (%p1028) target = $region36
      $region35: #{canny_pallas.1} parent=5 // pred_region
        %s1031 = ssub.s32 %s12, 2
        // Predicated region
        $region37: #{canny_pallas.1} parent=35 // pred_check
          %p1032 = pneg %p88
        $region38: #{canny_pallas.1} parent=35 // pred_check_branch
          %1034 = sbr.rel (%p1032) target = $region40
        $region39: #{canny_pallas.1} parent=35 // pred_region
          %s1035 = sand.u32 %s73, 1
          %s1036 = scalar_lea.sflag [#allocation4], %s1035
          %s1037 = sand.u32 %s73, 1
          %s1038 = smul.addr %s1037, 16
          %s1039 = scalar_lea.vmem [#allocation3], %s1038
          %1041 = dma.done %s1036, 256
        $region40: #{canny_pallas.1} parent=35 // pred_fallthru
          _
      $region36: #{canny_pallas.1} parent=5 // pred_fallthru
        _
    $region6: #{canny_pallas.1} parent=1 // loop_footer
      %s16 = sadd.s32 1, %s12
    $region7: #{canny_pallas.1} parent=1 // loop_footer_branch
      %11 = sbr.rel target = $region3
    $region8: #{canny_pallas.1} parent=1 // loop_exit
      _
    %1042 = vsyncpa [#allocation4], 1
    %s1043 = scalar_lea.sflag [#allocation4], 1
    %1044 = vsyncpa %s1043, 1

</llo_original>
